<compile_context>
chip_gen: v6e
topology: v6e:2x2x1
jax: 0.10.0
libtpu: 0.0.40
codegen_flags: <defaults>
</compile_context>

<pallas_src>
import math

import jax
import jax.numpy as jnp
from jax.experimental import pallas as pl
from jax.experimental.pallas import tpu as pltpu


def _gfp_kernel(x_ref, wcat_ref, phase_ref, out_ref):
    # x_ref:     (TB, 1)   time steps on sublanes
    # wcat_ref:  (1, 2H)   [W*2pi, W*2pi] on lanes (VMEM-resident, const idx map)
    # phase_ref: (1, 2H)   [0..0, pi/2..pi/2]
    # out_ref:   (TB, 2H)  single lane-dense store
    out_ref[...] = jnp.sin(x_ref[...] * wcat_ref[...] + phase_ref[...])


def init_gfp(key, embed_dim, scale=30.0):
    """Returns (W, wcat, phase).

    W matches the torch parameter (randn(embed_dim//2) * scale).
    wcat/phase are the precomputed kernel-side constants (folded once at init
    since the parameter is fixed / requires_grad=False).
    """
    half = embed_dim // 2
    W = jax.random.normal(key, (half,), dtype=jnp.float32) * scale
    wf = W * (2.0 * math.pi)
    wcat = jnp.concatenate([wf, wf]).reshape(1, embed_dim)
    phase = jnp.concatenate(
        [jnp.zeros((half,), jnp.float32),
         jnp.full((half,), 0.5 * math.pi, jnp.float32)]
    ).reshape(1, embed_dim)
    return W, wcat, phase


def gaussian_fourier_projection(x, wcat, phase, *, block_b=None):
    """x: (B,) float32, wcat/phase: (1, 2H) -> (B, 2H) float32."""
    B = x.shape[0]
    two_h = wcat.shape[-1]

    x2 = x.astype(jnp.float32).reshape(B, 1)
    wcat2 = wcat.astype(jnp.float32).reshape(1, two_h)
    phase2 = phase.astype(jnp.float32).reshape(1, two_h)

    out_bytes = B * two_h * 4
    if block_b is None:
        # Double-buffered (TB, 2H) f32 output block <= ~8 MiB.
        cap = (8 * 1024 * 1024) // (2 * two_h * 4)
        cap = max(8, (cap // 8) * 8)
        block_b = min(2048, cap)
        # Large problems: force >=2 grid steps so both v7x TensorCores
        # contribute ("parallel" axis); harmless one extra step elsewhere.
        if out_bytes > (512 * 1024):
            block_b = min(block_b, max(8, pl.cdiv(pl.cdiv(B, 2), 8) * 8))
    else:
        # Round up to a multiple of 8 (second-to-last block dim rule).
        block_b = max(8, ((int(block_b) + 7) // 8) * 8)

    if block_b >= B:
        block_b = B  # one grid step; full-dim block is always layout-legal

    grid = (pl.cdiv(B, block_b),)

    out = pl.pallas_call(
        _gfp_kernel,
        out_shape=jax.ShapeDtypeStruct((B, two_h), jnp.float32),
        grid=grid,
        in_specs=[
            pl.BlockSpec((block_b, 1), lambda i: (i, 0)),    # batch tile of x
            pl.BlockSpec((1, two_h), lambda i: (0, 0)),      # wcat, VMEM-resident
            pl.BlockSpec((1, two_h), lambda i: (0, 0)),      # phase, VMEM-resident
        ],
        out_specs=pl.BlockSpec((block_b, two_h), lambda i: (i, 0)),
        compiler_params=pltpu.CompilerParams(
            dimension_semantics=("parallel",),  # shard batch across TCs on v7x
        ),
        cost_estimate=pl.CostEstimate(
            flops=2 * B * two_h,
            transcendentals=B * two_h,
            bytes_accessed=4 * (B + 2 * two_h + B * two_h),
        ),
    )(x2, wcat2, phase2)
    return out


def reference(x, W):
    # Exact torch ordering: x[:, None] * W[None, :] * 2 * pi
    x_proj = x[:, None] * W[None, :] * 2.0 * jnp.pi
    return jnp.concatenate([jnp.sin(x_proj), jnp.cos(x_proj)], axis=-1)


if __name__ == "__main__":
    key = jax.random.PRNGKey(0)
    k_w1, k_x1, k_w2, k_x2 = jax.random.split(key, 4)

    # Case 1: lane-dense output (2H = 256), default tile -> single grid step.
    embed_dim, batch, scale = 256, 64, 30.0
    W1, wcat1, phase1 = init_gfp(k_w1, embed_dim, scale)
    x1 = jax.random.uniform(k_x1, (batch,), dtype=jnp.float32)
    out1 = jax.block_until_ready(gaussian_fourier_projection(x1, wcat1, phase1))
    ref1 = reference(x1, W1)
    assert out1.shape == (batch, embed_dim), out1.shape
    assert jnp.allclose(out1, ref1, atol=2e-3, rtol=2e-3), "case 1 mismatch"

    # Case 2: toy torch config (embed_dim=64) + non-divisible batch with an
    # explicit small tile -> exercises the ragged final-block masking path
    # (no wrapper pad / slice, output written in a single HBM pass).
    embed_dim2, batch2 = 64, 50
    W2, wcat2, phase2 = init_gfp(k_w2, embed_dim2, scale)
    x2 = jax.random.uniform(k_x2, (batch2,), dtype=jnp.float32)
    out2 = jax.block_until_ready(
        gaussian_fourier_projection(x2, wcat2, phase2, block_b=16))  # grid of 4
    ref2 = reference(x2, W2)
    assert out2.shape == (batch2, embed_dim2), out2.shape
    assert jnp.allclose(out2, ref2, atol=2e-3, rtol=2e-3), "case 2 mismatch"

    print("KERNEL_OK")
</pallas_src>

<mosaic_0001>
module attributes {stable_mosaic.version = 11 : i64} {
  func.func @_gfp_kernel(%arg0: i32, %arg1: memref<64x1xf32, #tpu.memory_space<vmem>>, %arg2: memref<1x256xf32, #tpu.memory_space<vmem>>, %arg3: memref<1x256xf32, #tpu.memory_space<vmem>>, %arg4: memref<64x256xf32, #tpu.memory_space<vmem>>) attributes {dimension_semantics = [#tpu.dimension_semantics<parallel>], iteration_bounds = array<i64: 1>, scalar_prefetch = 0 : i64, scratch_operands = 0 : i64, tpu.core_type = #tpu.core_type<tc>, window_params = [{transform_indices = @transform_0, window_bounds = array<i64: 64, 1>}, {pipeline_mode = #tpu.pipeline_mode<synchronous>, transform_indices = @transform_1, window_bounds = array<i64: 1, 256>}, {pipeline_mode = #tpu.pipeline_mode<synchronous>, transform_indices = @transform_2, window_bounds = array<i64: 1, 256>}, {transform_indices = @transform_3, window_bounds = array<i64: 64, 256>}]} {
    %c0 = arith.constant 0 : index
    %c0_0 = arith.constant 0 : index
    %0 = vector.load %arg1[%c0, %c0_0] : memref<64x1xf32, #tpu.memory_space<vmem>>, vector<64x1xf32>
    %c0_1 = arith.constant 0 : index
    %c0_2 = arith.constant 0 : index
    %1 = vector.load %arg2[%c0_1, %c0_2] : memref<1x256xf32, #tpu.memory_space<vmem>>, vector<1x256xf32>
    %2 = vector.broadcast %0 : vector<64x1xf32> to vector<64x256xf32>
    %3 = vector.broadcast %1 : vector<1x256xf32> to vector<64x256xf32>
    %4 = arith.mulf %2, %3 : vector<64x256xf32>
    %c0_3 = arith.constant 0 : index
    %c0_4 = arith.constant 0 : index
    %5 = vector.load %arg3[%c0_3, %c0_4] : memref<1x256xf32, #tpu.memory_space<vmem>>, vector<1x256xf32>
    %6 = vector.broadcast %5 : vector<1x256xf32> to vector<64x256xf32>
    %7 = arith.addf %4, %6 : vector<64x256xf32>
    %8 = math.sin %7 : vector<64x256xf32>
    %c0_5 = arith.constant 0 : index
    %c0_6 = arith.constant 0 : index
    %9 = vector.load %arg4[%c0_5, %c0_6] : memref<64x256xf32, #tpu.memory_space<vmem>>, vector<64x256xf32>
    tpu.vector_store %arg4[%c0_5, %c0_6], %8 {strides = array<i32>} : memref<64x256xf32, #tpu.memory_space<vmem>>, vector<64x256xf32>,
    return
  }
  func.func @transform_0(%arg0: i32) -> (i32, i32) {
    %c0_i32 = arith.constant 0 : i32
    %c0_i32_0 = arith.constant 0 : i32
    return %arg0, %c0_i32 : i32, i32
  }
  func.func @transform_1(%arg0: i32) -> (i32, i32) {
    %c0_i32 = arith.constant 0 : i32
    %c0_i32_0 = arith.constant 0 : i32
    %c0_i32_1 = arith.constant 0 : i32
    return %c0_i32, %c0_i32_0 : i32, i32
  }
  func.func @transform_2(%arg0: i32) -> (i32, i32) {
    %c0_i32 = arith.constant 0 : i32
    %c0_i32_0 = arith.constant 0 : i32
    %c0_i32_1 = arith.constant 0 : i32
    return %c0_i32, %c0_i32_0 : i32, i32
  }
  func.func @transform_3(%arg0: i32) -> (i32, i32) {
    %c0_i32 = arith.constant 0 : i32
    %c0_i32_0 = arith.constant 0 : i32
    return %arg0, %c0_i32 : i32, i32
  }
}

</mosaic_0001>

<llo_original>
// kernel: tpu_custom_call.1
$region0: #{tpu_custom_call.1}
  #allocation0 [shape = 'u32[]', space=smem, size = 0x4, offset = 0x4, fixed_abs, tag = 'smem constant byte address 0x4 - core index']
  #allocation1 [shape = 'u32[144,128]{1,0:T(1,128)}', space=vmem, size = 0x12000, scoped, tag = 'internal scratch']
  %s0 = inlined_call_operand.vmem [shape: f32[64,1], index: 0, kind: input, shape index: {}]
  %s1 = inlined_call_operand.vmem [shape: f32[1,256], index: 1, kind: input, shape index: {}]
  %s2 = inlined_call_operand.vmem [shape: f32[1,256], index: 2, kind: input, shape index: {}]
  %s3 = inlined_call_operand.hbm [shape: f32[64,256], index: 3, kind: output, shape index: {}]
  %s4 = sld [smem:[#allocation0]]
  $region22: #{tpu_custom_call.1} parent=0
    _
  %s6 = ssub.s32 1, %s4
  %s7 = scalar_select 0, %s6, %s4
  $region1: #{tpu_custom_call.1} parent=0
    #allocation2 [shape = 'u8[65536]{0}', space=vmem, size = 0x10000, scoped, tag = 'output window, operand 0, single buffered']
    #allocation3 [shape = 's32[1]{0}', space=sflag, size = 0x4, scoped, tag = 'scoped memory for tpu_custom_call.1']
    %8 = vsyncpa [#allocation3], 0
    // Predicated region
    $region2: #{tpu_custom_call.1} parent=1 // pred_check
      _
    $region3: #{tpu_custom_call.1} parent=1 // pred_check_branch
      %10 = sbr.rel (0) target = $region5
    $region4: #{tpu_custom_call.1} parent=1 // pred_region
      _
    $region5: #{tpu_custom_call.1} parent=1 // pred_fallthru
      _
    // Predicated region
    $region6: #{tpu_custom_call.1} parent=1 // pred_check
      _
    $region7: #{tpu_custom_call.1} parent=1 // pred_check_branch
      %12 = sbr.rel (0) target = $region9
    $region8: #{tpu_custom_call.1} parent=1 // pred_region
      _
    $region9: #{tpu_custom_call.1} parent=1 // pred_fallthru
      _
    // Predicated region
    $region10: #{tpu_custom_call.1} parent=1 // pred_check
      _
    $region11: #{tpu_custom_call.1} parent=1 // pred_check_branch
      %14 = sbr.rel (0) target = $region13
    $region12: #{tpu_custom_call.1} parent=1 // pred_region
      _
    $region13: #{tpu_custom_call.1} parent=1 // pred_fallthru
      _
    %v15 = vld [vmem:[%s0] sm:$0xff]
    %v16 = vld [vmem:[%s0 + $0x8] sm:$0xff]
    %v17 = vld [vmem:[%s0 + $0x10] sm:$0xff]
    %v18 = vld [vmem:[%s0 + $0x18] sm:$0xff]
    %v19 = vld [vmem:[%s0 + $0x20] sm:$0xff]
    %v20 = vld [vmem:[%s0 + $0x28] sm:$0xff]
    %v21 = vld [vmem:[%s0 + $0x30] sm:$0xff]
    %v22 = vld [vmem:[%s0 + $0x38] sm:$0xff]
    %v23 = vld [vmem:[%s1] sm:$0x3]
    %25 = vset.pattern.permute.xlu0 0
    %26 = vperm.xlu0 %25, %v15
    %v27 = vpop.permute.xlu0 %26
    %30 = vset.pattern.permute.xlu0 0
    %31 = vperm.xlu0 %30, %v16
    %v32 = vpop.permute.xlu0 %31
    %35 = vset.pattern.permute.xlu0 0
    %36 = vperm.xlu0 %35, %v17
    %v37 = vpop.permute.xlu0 %36
    %40 = vset.pattern.permute.xlu0 0
    %41 = vperm.xlu0 %40, %v18
    %v42 = vpop.permute.xlu0 %41
    %45 = vset.pattern.permute.xlu0 0
    %46 = vperm.xlu0 %45, %v19
    %v47 = vpop.permute.xlu0 %46
    %50 = vset.pattern.permute.xlu0 0
    %51 = vperm.xlu0 %50, %v20
    %v52 = vpop.permute.xlu0 %51
    %55 = vset.pattern.permute.xlu0 0
    %56 = vperm.xlu0 %55, %v21
    %v57 = vpop.permute.xlu0 %56
    %60 = vset.pattern.permute.xlu0 0
    %61 = vperm.xlu0 %60, %v22
    %v62 = vpop.permute.xlu0 %61
    %v65 = vlaneseq
    %v66 = vshrl.u32 %v65, 7
    %v67 = vsub.s32 0, %v66
    %v68 = vrot.slane %v23, %v67
    %v69 = vlaneseq
    %v70 = vshrl.u32 %v69, 7
    %v71 = vsub.s32 1, %v70
    %v72 = vrot.slane %v23, %v71
    %v75 = vmul.f32 %v27, %v68
    %v76 = vmul.f32 %v27, %v72
    %v77 = vmul.f32 %v32, %v68
    %v78 = vmul.f32 %v32, %v72
    %v79 = vmul.f32 %v37, %v68
    %v80 = vmul.f32 %v37, %v72
    %v81 = vmul.f32 %v42, %v68
    %v82 = vmul.f32 %v42, %v72
    %v83 = vmul.f32 %v47, %v68
    %v84 = vmul.f32 %v47, %v72
    %v85 = vmul.f32 %v52, %v68
    %v86 = vmul.f32 %v52, %v72
    %v87 = vmul.f32 %v57, %v68
    %v88 = vmul.f32 %v57, %v72
    %v89 = vmul.f32 %v62, %v68
    %v90 = vmul.f32 %v62, %v72
    %v91 = vld [vmem:[%s2] sm:$0x3]
    %v93 = vlaneseq
    %v94 = vshrl.u32 %v93, 7
    %v95 = vsub.s32 0, %v94
    %v96 = vrot.slane %v91, %v95
    %v97 = vlaneseq
    %v98 = vshrl.u32 %v97, 7
    %v99 = vsub.s32 1, %v98
    %v100 = vrot.slane %v91, %v99
    %v103 = vadd.f32 %v75, %v96
    %v104 = vadd.f32 %v76, %v100
    %v105 = vadd.f32 %v77, %v96
    %v106 = vadd.f32 %v78, %v100
    %v107 = vadd.f32 %v79, %v96
    %v108 = vadd.f32 %v80, %v100
    %v109 = vadd.f32 %v81, %v96
    %v110 = vadd.f32 %v82, %v100
    %v111 = vadd.f32 %v83, %v96
    %v112 = vadd.f32 %v84, %v100
    %v113 = vadd.f32 %v85, %v96
    %v114 = vadd.f32 %v86, %v100
    %v115 = vadd.f32 %v87, %v96
    %v116 = vadd.f32 %v88, %v100
    %v117 = vadd.f32 %v89, %v96
    %v118 = vadd.f32 %v90, %v100
    %v119 = vand.u32 2147483647, %v103
    %vm120 = vcmp.le.f32.partialorder %v119, 0.7853982
    %vm121 = vcmp.lt.s32.totalorder %v103, 0
    %v122 = vand.u32 %v103, 2139095040
    %v123 = vshrl.u32 %v122, 23
    %v124 = vsub.s32 %v123, 127
    %v125 = vand.u32 2147483647, %v103
    %v126 = vand.u32 %v125, 8388607
    %v127 = vor.u32 %v126, 8388608
    %v128 = vsub.s32 0, %v127
    %v129 = vadd.s32 %v124, 1
    %vm130 = vcmp.gt.s32.totalorder %v129, 0
    %v131 = vsel %vm130, %v129, 0
    %v132 = vshrl.u32 %v131, 5
    %v133 = vand.u32 %v131, 31
    %v134 = vsub.s32 32, %v133
    %v135 = vshrl.u32 683565275, %v134
    %v136 = vshll.u32 683565275, %v133
    %v137 = vshrl.u32 2475754826, %v134
    %v138 = vor.u32 %v136, %v137
    %v139 = vshll.u32 2475754826, %v133
    %v140 = vshrl.u32 2131351028, %v134
    %v141 = vor.u32 %v139, %v140
    %v142 = vshll.u32 2131351028, %v133
    %v143 = vshrl.u32 2102212464, %v134
    %v144 = vor.u32 %v142, %v143
    %v145 = vshll.u32 2102212464, %v133
    %v146 = vshrl.u32 920167782, %v134
    %v147 = vor.u32 %v145, %v146
    %v148 = vshll.u32 920167782, %v133
    %v149 = vshrl.u32 1326507024, %v134
    %v150 = vor.u32 %v148, %v149
    %vm151 = vcmp.lt.s32.totalorder %v132, 1
    %vm152 = vcmp.lt.s32.totalorder %v132, 2
    %vm153 = vcmp.lt.s32.totalorder %v132, 3
    %vm154 = vcmp.lt.s32.totalorder %v132, 4
    %v155 = vsel %vm151, %v135, %v138
    %v156 = vsel %vm154, %v144, 2102212464
    %v157 = vsel %vm153, %v141, %v156
    %v158 = vsel %vm152, %v155, %v157
    %v159 = vsel %vm151, %v138, %v141
    %v160 = vsel %vm154, %v147, 920167782
    %v161 = vsel %vm153, %v144, %v160
    %v162 = vsel %vm152, %v159, %v161
    %v163 = vsel %vm151, %v141, %v144
    %v164 = vsel %vm154, %v150, 1326507024
    %v165 = vsel %vm153, %v147, %v164
    %v166 = vsel %vm152, %v163, %v165
    %v167 = vshll.u32 %v127, 8
    %v168 = vmul.u32.u64.compose %v167, %v166
    %v169 = vextract.low.u32 %v168
    %v170 = vextract.high.u32 %v168
    %v171 = vmul.u32.u64.compose %v167, %v162
    %v172 = vextract.low.u32 %v171
    %v173 = vextract.high.u32 %v171
    %v174 = vmul.u32 %v167, %v158
    %v175 = vadd.s32 %v170, %v172
    %vm176 = vc.u32 %v170, %v172
    %v177 = vadd.s32 %v173, 1
    %v178 = vsel %vm176, %v177, %v173
    %v179 = vadd.s32 %v174, %v178
    %v180 = vadd.s32 %v179, 536870912
    %v181 = vshrl.u32 %v180, 30
    %v182 = vshll.u32 %v181, 30
    %v183 = vsub.s32 %v179, %v182
    %vm184 = vcmp.lt.s32.totalorder %v183, 0
    %v185 = vsub.s32 0, %v183
    %v186 = vsel %vm184, %v185, %v183
    %v187 = vclz %v186
    %v188 = vsub.s32 %v187, 2
    %vm189 = vcmp.gt.s32.totalorder 0, %v188
    %v190 = vsel %vm189, 0, %v188
    %v191 = vsub.s32 32, %v190
    %v192 = vshll.u32 %v183, %v190
    %v193 = vshrl.u32 %v175, %v191
    %v194 = vor.u32 %v192, %v193
    %v195 = vsub.s32 4294967266, %v190
    %v196 = vadd.s32 %v195, 127
    %v197 = vshll.u32 %v196, 23
    %v198 = vor.u32 4788187, %v197
    %v199 = vand.u32 2147483647, %v198
    %v201 = vcvt.s32.f32 %v194
    %v202 = vmul.f32 %v201, %v199
    %v203 = vxor.u32 %v202, 2147483648
    %v204 = vsel %vm121, %v203, %v202
    %v205 = vsub.s32 4, %v181
    %v206 = vsel %vm121, %v205, %v181
    %v207 = vsel %vm120, %v103, %v204
    %v208 = vsel %vm120, 0, %v206
    %v209 = vcosq.f32.pop %v207
    %v210 = vsinq.f32.pop %v207
    %vm211 = vweird.f32 %v103
    %v212 = vadd.s32 %v208, 3
    %v213 = vand.u32 %v212, 3
    %vm214 = vcmp.lt.s32.totalorder %v213, 2
    %vm215 = vcmp.eq.s32.totalorder %v213, 0
    %v216 = vxor.u32 %v210, 2147483648
    %v217 = vsel %vm215, %v209, %v216
    %vm218 = vcmp.eq.s32.totalorder %v213, 2
    %v219 = vxor.u32 %v209, 2147483648
    %v220 = vsel %vm218, %v219, %v210
    %v221 = vsel %vm214, %v217, %v220
    %v222 = vsel %vm211, nan, %v221
    %v223 = vand.u32 2147483647, %v104
    %vm224 = vcmp.le.f32.partialorder %v223, 0.7853982
    %vm225 = vcmp.lt.s32.totalorder %v104, 0
    %v226 = vand.u32 %v104, 2139095040
    %v227 = vshrl.u32 %v226, 23
    %v228 = vsub.s32 %v227, 127
    %v229 = vand.u32 2147483647, %v104
    %v230 = vand.u32 %v229, 8388607
    %v231 = vor.u32 %v230, 8388608
    %v232 = vsub.s32 0, %v231
    %v233 = vadd.s32 %v228, 1
    %vm234 = vcmp.gt.s32.totalorder %v233, 0
    %v235 = vsel %vm234, %v233, 0
    %v236 = vshrl.u32 %v235, 5
    %v237 = vand.u32 %v235, 31
    %v238 = vsub.s32 32, %v237
    %v239 = vshrl.u32 683565275, %v238
    %v240 = vshll.u32 683565275, %v237
    %v241 = vshrl.u32 2475754826, %v238
    %v242 = vor.u32 %v240, %v241
    %v243 = vshll.u32 2475754826, %v237
    %v244 = vshrl.u32 2131351028, %v238
    %v245 = vor.u32 %v243, %v244
    %v246 = vshll.u32 2131351028, %v237
    %v247 = vshrl.u32 2102212464, %v238
    %v248 = vor.u32 %v246, %v247
    %v249 = vshll.u32 2102212464, %v237
    %v250 = vshrl.u32 920167782, %v238
    %v251 = vor.u32 %v249, %v250
    %v252 = vshll.u32 920167782, %v237
    %v253 = vshrl.u32 1326507024, %v238
    %v254 = vor.u32 %v252, %v253
    %vm255 = vcmp.lt.s32.totalorder %v236, 1
    %vm256 = vcmp.lt.s32.totalorder %v236, 2
    %vm257 = vcmp.lt.s32.totalorder %v236, 3
    %vm258 = vcmp.lt.s32.totalorder %v236, 4
    %v259 = vsel %vm255, %v239, %v242
    %v260 = vsel %vm258, %v248, 2102212464
    %v261 = vsel %vm257, %v245, %v260
    %v262 = vsel %vm256, %v259, %v261
    %v263 = vsel %vm255, %v242, %v245
    %v264 = vsel %vm258, %v251, 920167782
    %v265 = vsel %vm257, %v248, %v264
    %v266 = vsel %vm256, %v263, %v265
    %v267 = vsel %vm255, %v245, %v248
    %v268 = vsel %vm258, %v254, 1326507024
    %v269 = vsel %vm257, %v251, %v268
    %v270 = vsel %vm256, %v267, %v269
    %v271 = vshll.u32 %v231, 8
    %v272 = vmul.u32.u64.compose %v271, %v270
    %v273 = vextract.low.u32 %v272
    %v274 = vextract.high.u32 %v272
    %v275 = vmul.u32.u64.compose %v271, %v266
    %v276 = vextract.low.u32 %v275
    %v277 = vextract.high.u32 %v275
    %v278 = vmul.u32 %v271, %v262
    %v279 = vadd.s32 %v274, %v276
    %vm280 = vc.u32 %v274, %v276
    %v281 = vadd.s32 %v277, 1
    %v282 = vsel %vm280, %v281, %v277
    %v283 = vadd.s32 %v278, %v282
    %v284 = vadd.s32 %v283, 536870912
    %v285 = vshrl.u32 %v284, 30
    %v286 = vshll.u32 %v285, 30
    %v287 = vsub.s32 %v283, %v286
    %vm288 = vcmp.lt.s32.totalorder %v287, 0
    %v289 = vsub.s32 0, %v287
    %v290 = vsel %vm288, %v289, %v287
    %v291 = vclz %v290
    %v292 = vsub.s32 %v291, 2
    %vm293 = vcmp.gt.s32.totalorder 0, %v292
    %v294 = vsel %vm293, 0, %v292
    %v295 = vsub.s32 32, %v294
    %v296 = vshll.u32 %v287, %v294
    %v297 = vshrl.u32 %v279, %v295
    %v298 = vor.u32 %v296, %v297
    %v299 = vsub.s32 4294967266, %v294
    %v300 = vadd.s32 %v299, 127
    %v301 = vshll.u32 %v300, 23
    %v302 = vor.u32 4788187, %v301
    %v303 = vand.u32 2147483647, %v302
    %v305 = vcvt.s32.f32 %v298
    %v306 = vmul.f32 %v305, %v303
    %v307 = vxor.u32 %v306, 2147483648
    %v308 = vsel %vm225, %v307, %v306
    %v309 = vsub.s32 4, %v285
    %v310 = vsel %vm225, %v309, %v285
    %v311 = vsel %vm224, %v104, %v308
    %v312 = vsel %vm224, 0, %v310
    %v313 = vcosq.f32.pop %v311
    %v314 = vsinq.f32.pop %v311
    %vm315 = vweird.f32 %v104
    %v316 = vadd.s32 %v312, 3
    %v317 = vand.u32 %v316, 3
    %vm318 = vcmp.lt.s32.totalorder %v317, 2
    %vm319 = vcmp.eq.s32.totalorder %v317, 0
    %v320 = vxor.u32 %v314, 2147483648
    %v321 = vsel %vm319, %v313, %v320
    %vm322 = vcmp.eq.s32.totalorder %v317, 2
    %v323 = vxor.u32 %v313, 2147483648
    %v324 = vsel %vm322, %v323, %v314
    %v325 = vsel %vm318, %v321, %v324
    %v326 = vsel %vm315, nan, %v325
    %v327 = vand.u32 2147483647, %v105
    %vm328 = vcmp.le.f32.partialorder %v327, 0.7853982
    %vm329 = vcmp.lt.s32.totalorder %v105, 0
    %v330 = vand.u32 %v105, 2139095040
    %v331 = vshrl.u32 %v330, 23
    %v332 = vsub.s32 %v331, 127
    %v333 = vand.u32 2147483647, %v105
    %v334 = vand.u32 %v333, 8388607
    %v335 = vor.u32 %v334, 8388608
    %v336 = vsub.s32 0, %v335
    %v337 = vadd.s32 %v332, 1
    %vm338 = vcmp.gt.s32.totalorder %v337, 0
    %v339 = vsel %vm338, %v337, 0
    %v340 = vshrl.u32 %v339, 5
    %v341 = vand.u32 %v339, 31
    %v342 = vsub.s32 32, %v341
    %v343 = vshrl.u32 683565275, %v342
    %v344 = vshll.u32 683565275, %v341
    %v345 = vshrl.u32 2475754826, %v342
    %v346 = vor.u32 %v344, %v345
    %v347 = vshll.u32 2475754826, %v341
    %v348 = vshrl.u32 2131351028, %v342
    %v349 = vor.u32 %v347, %v348
    %v350 = vshll.u32 2131351028, %v341
    %v351 = vshrl.u32 2102212464, %v342
    %v352 = vor.u32 %v350, %v351
    %v353 = vshll.u32 2102212464, %v341
    %v354 = vshrl.u32 920167782, %v342
    %v355 = vor.u32 %v353, %v354
    %v356 = vshll.u32 920167782, %v341
    %v357 = vshrl.u32 1326507024, %v342
    %v358 = vor.u32 %v356, %v357
    %vm359 = vcmp.lt.s32.totalorder %v340, 1
    %vm360 = vcmp.lt.s32.totalorder %v340, 2
    %vm361 = vcmp.lt.s32.totalorder %v340, 3
    %vm362 = vcmp.lt.s32.totalorder %v340, 4
    %v363 = vsel %vm359, %v343, %v346
    %v364 = vsel %vm362, %v352, 2102212464
    %v365 = vsel %vm361, %v349, %v364
    %v366 = vsel %vm360, %v363, %v365
    %v367 = vsel %vm359, %v346, %v349
    %v368 = vsel %vm362, %v355, 920167782
    %v369 = vsel %vm361, %v352, %v368
    %v370 = vsel %vm360, %v367, %v369
    %v371 = vsel %vm359, %v349, %v352
    %v372 = vsel %vm362, %v358, 1326507024
    %v373 = vsel %vm361, %v355, %v372
    %v374 = vsel %vm360, %v371, %v373
    %v375 = vshll.u32 %v335, 8
    %v376 = vmul.u32.u64.compose %v375, %v374
    %v377 = vextract.low.u32 %v376
    %v378 = vextract.high.u32 %v376
    %v379 = vmul.u32.u64.compose %v375, %v370
    %v380 = vextract.low.u32 %v379
    %v381 = vextract.high.u32 %v379
    %v382 = vmul.u32 %v375, %v366
    %v383 = vadd.s32 %v378, %v380
    %vm384 = vc.u32 %v378, %v380
    %v385 = vadd.s32 %v381, 1
    %v386 = vsel %vm384, %v385, %v381
    %v387 = vadd.s32 %v382, %v386
    %v388 = vadd.s32 %v387, 536870912
    %v389 = vshrl.u32 %v388, 30
    %v390 = vshll.u32 %v389, 30
    %v391 = vsub.s32 %v387, %v390
    %vm392 = vcmp.lt.s32.totalorder %v391, 0
    %v393 = vsub.s32 0, %v391
    %v394 = vsel %vm392, %v393, %v391
    %v395 = vclz %v394
    %v396 = vsub.s32 %v395, 2
    %vm397 = vcmp.gt.s32.totalorder 0, %v396
    %v398 = vsel %vm397, 0, %v396
    %v399 = vsub.s32 32, %v398
    %v400 = vshll.u32 %v391, %v398
    %v401 = vshrl.u32 %v383, %v399
    %v402 = vor.u32 %v400, %v401
    %v403 = vsub.s32 4294967266, %v398
    %v404 = vadd.s32 %v403, 127
    %v405 = vshll.u32 %v404, 23
    %v406 = vor.u32 4788187, %v405
    %v407 = vand.u32 2147483647, %v406
    %v409 = vcvt.s32.f32 %v402
    %v410 = vmul.f32 %v409, %v407
    %v411 = vxor.u32 %v410, 2147483648
    %v412 = vsel %vm329, %v411, %v410
    %v413 = vsub.s32 4, %v389
    %v414 = vsel %vm329, %v413, %v389
    %v415 = vsel %vm328, %v105, %v412
    %v416 = vsel %vm328, 0, %v414
    %v417 = vcosq.f32.pop %v415
    %v418 = vsinq.f32.pop %v415
    %vm419 = vweird.f32 %v105
    %v420 = vadd.s32 %v416, 3
    %v421 = vand.u32 %v420, 3
    %vm422 = vcmp.lt.s32.totalorder %v421, 2
    %vm423 = vcmp.eq.s32.totalorder %v421, 0
    %v424 = vxor.u32 %v418, 2147483648
    %v425 = vsel %vm423, %v417, %v424
    %vm426 = vcmp.eq.s32.totalorder %v421, 2
    %v427 = vxor.u32 %v417, 2147483648
    %v428 = vsel %vm426, %v427, %v418
    %v429 = vsel %vm422, %v425, %v428
    %v430 = vsel %vm419, nan, %v429
    %v431 = vand.u32 2147483647, %v106
    %vm432 = vcmp.le.f32.partialorder %v431, 0.7853982
    %vm433 = vcmp.lt.s32.totalorder %v106, 0
    %v434 = vand.u32 %v106, 2139095040
    %v435 = vshrl.u32 %v434, 23
    %v436 = vsub.s32 %v435, 127
    %v437 = vand.u32 2147483647, %v106
    %v438 = vand.u32 %v437, 8388607
    %v439 = vor.u32 %v438, 8388608
    %v440 = vsub.s32 0, %v439
    %v441 = vadd.s32 %v436, 1
    %vm442 = vcmp.gt.s32.totalorder %v441, 0
    %v443 = vsel %vm442, %v441, 0
    %v444 = vshrl.u32 %v443, 5
    %v445 = vand.u32 %v443, 31
    %v446 = vsub.s32 32, %v445
    %v447 = vshrl.u32 683565275, %v446
    %v448 = vshll.u32 683565275, %v445
    %v449 = vshrl.u32 2475754826, %v446
    %v450 = vor.u32 %v448, %v449
    %v451 = vshll.u32 2475754826, %v445
    %v452 = vshrl.u32 2131351028, %v446
    %v453 = vor.u32 %v451, %v452
    %v454 = vshll.u32 2131351028, %v445
    %v455 = vshrl.u32 2102212464, %v446
    %v456 = vor.u32 %v454, %v455
    %v457 = vshll.u32 2102212464, %v445
    %v458 = vshrl.u32 920167782, %v446
    %v459 = vor.u32 %v457, %v458
    %v460 = vshll.u32 920167782, %v445
    %v461 = vshrl.u32 1326507024, %v446
    %v462 = vor.u32 %v460, %v461
    %vm463 = vcmp.lt.s32.totalorder %v444, 1
    %vm464 = vcmp.lt.s32.totalorder %v444, 2
    %vm465 = vcmp.lt.s32.totalorder %v444, 3
    %vm466 = vcmp.lt.s32.totalorder %v444, 4
    %v467 = vsel %vm463, %v447, %v450
    %v468 = vsel %vm466, %v456, 2102212464
    %v469 = vsel %vm465, %v453, %v468
    %v470 = vsel %vm464, %v467, %v469
    %v471 = vsel %vm463, %v450, %v453
    %v472 = vsel %vm466, %v459, 920167782
    %v473 = vsel %vm465, %v456, %v472
    %v474 = vsel %vm464, %v471, %v473
    %v475 = vsel %vm463, %v453, %v456
    %v476 = vsel %vm466, %v462, 1326507024
    %v477 = vsel %vm465, %v459, %v476
    %v478 = vsel %vm464, %v475, %v477
    %v479 = vshll.u32 %v439, 8
    %v480 = vmul.u32.u64.compose %v479, %v478
    %v481 = vextract.low.u32 %v480
    %v482 = vextract.high.u32 %v480
    %v483 = vmul.u32.u64.compose %v479, %v474
    %v484 = vextract.low.u32 %v483
    %v485 = vextract.high.u32 %v483
    %v486 = vmul.u32 %v479, %v470
    %v487 = vadd.s32 %v482, %v484
    %vm488 = vc.u32 %v482, %v484
    %v489 = vadd.s32 %v485, 1
    %v490 = vsel %vm488, %v489, %v485
    %v491 = vadd.s32 %v486, %v490
    %v492 = vadd.s32 %v491, 536870912
    %v493 = vshrl.u32 %v492, 30
    %v494 = vshll.u32 %v493, 30
    %v495 = vsub.s32 %v491, %v494
    %vm496 = vcmp.lt.s32.totalorder %v495, 0
    %v497 = vsub.s32 0, %v495
    %v498 = vsel %vm496, %v497, %v495
    %v499 = vclz %v498
    %v500 = vsub.s32 %v499, 2
    %vm501 = vcmp.gt.s32.totalorder 0, %v500
    %v502 = vsel %vm501, 0, %v500
    %v503 = vsub.s32 32, %v502
    %v504 = vshll.u32 %v495, %v502
    %v505 = vshrl.u32 %v487, %v503
    %v506 = vor.u32 %v504, %v505
    %v507 = vsub.s32 4294967266, %v502
    %v508 = vadd.s32 %v507, 127
    %v509 = vshll.u32 %v508, 23
    %v510 = vor.u32 4788187, %v509
    %v511 = vand.u32 2147483647, %v510
    %v513 = vcvt.s32.f32 %v506
    %v514 = vmul.f32 %v513, %v511
    %v515 = vxor.u32 %v514, 2147483648
    %v516 = vsel %vm433, %v515, %v514
    %v517 = vsub.s32 4, %v493
    %v518 = vsel %vm433, %v517, %v493
    %v519 = vsel %vm432, %v106, %v516
    %v520 = vsel %vm432, 0, %v518
    %v521 = vcosq.f32.pop %v519
    %v522 = vsinq.f32.pop %v519
    %vm523 = vweird.f32 %v106
    %v524 = vadd.s32 %v520, 3
    %v525 = vand.u32 %v524, 3
    %vm526 = vcmp.lt.s32.totalorder %v525, 2
    %vm527 = vcmp.eq.s32.totalorder %v525, 0
    %v528 = vxor.u32 %v522, 2147483648
    %v529 = vsel %vm527, %v521, %v528
    %vm530 = vcmp.eq.s32.totalorder %v525, 2
    %v531 = vxor.u32 %v521, 2147483648
    %v532 = vsel %vm530, %v531, %v522
    %v533 = vsel %vm526, %v529, %v532
    %v534 = vsel %vm523, nan, %v533
    %v535 = vand.u32 2147483647, %v107
    %vm536 = vcmp.le.f32.partialorder %v535, 0.7853982
    %vm537 = vcmp.lt.s32.totalorder %v107, 0
    %v538 = vand.u32 %v107, 2139095040
    %v539 = vshrl.u32 %v538, 23
    %v540 = vsub.s32 %v539, 127
    %v541 = vand.u32 2147483647, %v107
    %v542 = vand.u32 %v541, 8388607
    %v543 = vor.u32 %v542, 8388608
    %v544 = vsub.s32 0, %v543
    %v545 = vadd.s32 %v540, 1
    %vm546 = vcmp.gt.s32.totalorder %v545, 0
    %v547 = vsel %vm546, %v545, 0
    %v548 = vshrl.u32 %v547, 5
    %v549 = vand.u32 %v547, 31
    %v550 = vsub.s32 32, %v549
    %v551 = vshrl.u32 683565275, %v550
    %v552 = vshll.u32 683565275, %v549
    %v553 = vshrl.u32 2475754826, %v550
    %v554 = vor.u32 %v552, %v553
    %v555 = vshll.u32 2475754826, %v549
    %v556 = vshrl.u32 2131351028, %v550
    %v557 = vor.u32 %v555, %v556
    %v558 = vshll.u32 2131351028, %v549
    %v559 = vshrl.u32 2102212464, %v550
    %v560 = vor.u32 %v558, %v559
    %v561 = vshll.u32 2102212464, %v549
    %v562 = vshrl.u32 920167782, %v550
    %v563 = vor.u32 %v561, %v562
    %v564 = vshll.u32 920167782, %v549
    %v565 = vshrl.u32 1326507024, %v550
    %v566 = vor.u32 %v564, %v565
    %vm567 = vcmp.lt.s32.totalorder %v548, 1
    %vm568 = vcmp.lt.s32.totalorder %v548, 2
    %vm569 = vcmp.lt.s32.totalorder %v548, 3
    %vm570 = vcmp.lt.s32.totalorder %v548, 4
    %v571 = vsel %vm567, %v551, %v554
    %v572 = vsel %vm570, %v560, 2102212464
    %v573 = vsel %vm569, %v557, %v572
    %v574 = vsel %vm568, %v571, %v573
    %v575 = vsel %vm567, %v554, %v557
    %v576 = vsel %vm570, %v563, 920167782
    %v577 = vsel %vm569, %v560, %v576
    %v578 = vsel %vm568, %v575, %v577
    %v579 = vsel %vm567, %v557, %v560
    %v580 = vsel %vm570, %v566, 1326507024
    %v581 = vsel %vm569, %v563, %v580
    %v582 = vsel %vm568, %v579, %v581
    %v583 = vshll.u32 %v543, 8
    %v584 = vmul.u32.u64.compose %v583, %v582
    %v585 = vextract.low.u32 %v584
    %v586 = vextract.high.u32 %v584
    %v587 = vmul.u32.u64.compose %v583, %v578
    %v588 = vextract.low.u32 %v587
    %v589 = vextract.high.u32 %v587
    %v590 = vmul.u32 %v583, %v574
    %v591 = vadd.s32 %v586, %v588
    %vm592 = vc.u32 %v586, %v588
    %v593 = vadd.s32 %v589, 1
    %v594 = vsel %vm592, %v593, %v589
    %v595 = vadd.s32 %v590, %v594
    %v596 = vadd.s32 %v595, 536870912
    %v597 = vshrl.u32 %v596, 30
    %v598 = vshll.u32 %v597, 30
    %v599 = vsub.s32 %v595, %v598
    %vm600 = vcmp.lt.s32.totalorder %v599, 0
    %v601 = vsub.s32 0, %v599
    %v602 = vsel %vm600, %v601, %v599
    %v603 = vclz %v602
    %v604 = vsub.s32 %v603, 2
    %vm605 = vcmp.gt.s32.totalorder 0, %v604
    %v606 = vsel %vm605, 0, %v604
    %v607 = vsub.s32 32, %v606
    %v608 = vshll.u32 %v599, %v606
    %v609 = vshrl.u32 %v591, %v607
    %v610 = vor.u32 %v608, %v609
    %v611 = vsub.s32 4294967266, %v606
    %v612 = vadd.s32 %v611, 127
    %v613 = vshll.u32 %v612, 23
    %v614 = vor.u32 4788187, %v613
    %v615 = vand.u32 2147483647, %v614
    %v617 = vcvt.s32.f32 %v610
    %v618 = vmul.f32 %v617, %v615
    %v619 = vxor.u32 %v618, 2147483648
    %v620 = vsel %vm537, %v619, %v618
    %v621 = vsub.s32 4, %v597
    %v622 = vsel %vm537, %v621, %v597
    %v623 = vsel %vm536, %v107, %v620
    %v624 = vsel %vm536, 0, %v622
    %v625 = vcosq.f32.pop %v623
    %v626 = vsinq.f32.pop %v623
    %vm627 = vweird.f32 %v107
    %v628 = vadd.s32 %v624, 3
    %v629 = vand.u32 %v628, 3
    %vm630 = vcmp.lt.s32.totalorder %v629, 2
    %vm631 = vcmp.eq.s32.totalorder %v629, 0
    %v632 = vxor.u32 %v626, 2147483648
    %v633 = vsel %vm631, %v625, %v632
    %vm634 = vcmp.eq.s32.totalorder %v629, 2
    %v635 = vxor.u32 %v625, 2147483648
    %v636 = vsel %vm634, %v635, %v626
    %v637 = vsel %vm630, %v633, %v636
    %v638 = vsel %vm627, nan, %v637
    %v639 = vand.u32 2147483647, %v108
    %vm640 = vcmp.le.f32.partialorder %v639, 0.7853982
    %vm641 = vcmp.lt.s32.totalorder %v108, 0
    %v642 = vand.u32 %v108, 2139095040
    %v643 = vshrl.u32 %v642, 23
    %v644 = vsub.s32 %v643, 127
    %v645 = vand.u32 2147483647, %v108
    %v646 = vand.u32 %v645, 8388607
    %v647 = vor.u32 %v646, 8388608
    %v648 = vsub.s32 0, %v647
    %v649 = vadd.s32 %v644, 1
    %vm650 = vcmp.gt.s32.totalorder %v649, 0
    %v651 = vsel %vm650, %v649, 0
    %v652 = vshrl.u32 %v651, 5
    %v653 = vand.u32 %v651, 31
    %v654 = vsub.s32 32, %v653
    %v655 = vshrl.u32 683565275, %v654
    %v656 = vshll.u32 683565275, %v653
    %v657 = vshrl.u32 2475754826, %v654
    %v658 = vor.u32 %v656, %v657
    %v659 = vshll.u32 2475754826, %v653
    %v660 = vshrl.u32 2131351028, %v654
    %v661 = vor.u32 %v659, %v660
    %v662 = vshll.u32 2131351028, %v653
    %v663 = vshrl.u32 2102212464, %v654
    %v664 = vor.u32 %v662, %v663
    %v665 = vshll.u32 2102212464, %v653
    %v666 = vshrl.u32 920167782, %v654
    %v667 = vor.u32 %v665, %v666
    %v668 = vshll.u32 920167782, %v653
    %v669 = vshrl.u32 1326507024, %v654
    %v670 = vor.u32 %v668, %v669
    %vm671 = vcmp.lt.s32.totalorder %v652, 1
    %vm672 = vcmp.lt.s32.totalorder %v652, 2
    %vm673 = vcmp.lt.s32.totalorder %v652, 3
    %vm674 = vcmp.lt.s32.totalorder %v652, 4
    %v675 = vsel %vm671, %v655, %v658
    %v676 = vsel %vm674, %v664, 2102212464
    %v677 = vsel %vm673, %v661, %v676
    %v678 = vsel %vm672, %v675, %v677
    %v679 = vsel %vm671, %v658, %v661
    %v680 = vsel %vm674, %v667, 920167782
    %v681 = vsel %vm673, %v664, %v680
    %v682 = vsel %vm672, %v679, %v681
    %v683 = vsel %vm671, %v661, %v664
    %v684 = vsel %vm674, %v670, 1326507024
    %v685 = vsel %vm673, %v667, %v684
    %v686 = vsel %vm672, %v683, %v685
    %v687 = vshll.u32 %v647, 8
    %v688 = vmul.u32.u64.compose %v687, %v686
    %v689 = vextract.low.u32 %v688
    %v690 = vextract.high.u32 %v688
    %v691 = vmul.u32.u64.compose %v687, %v682
    %v692 = vextract.low.u32 %v691
    %v693 = vextract.high.u32 %v691
    %v694 = vmul.u32 %v687, %v678
    %v695 = vadd.s32 %v690, %v692
    %vm696 = vc.u32 %v690, %v692
    %v697 = vadd.s32 %v693, 1
    %v698 = vsel %vm696, %v697, %v693
    %v699 = vadd.s32 %v694, %v698
    %v700 = vadd.s32 %v699, 536870912
    %v701 = vshrl.u32 %v700, 30
    %v702 = vshll.u32 %v701, 30
    %v703 = vsub.s32 %v699, %v702
    %vm704 = vcmp.lt.s32.totalorder %v703, 0
    %v705 = vsub.s32 0, %v703
    %v706 = vsel %vm704, %v705, %v703
    %v707 = vclz %v706
    %v708 = vsub.s32 %v707, 2
    %vm709 = vcmp.gt.s32.totalorder 0, %v708
    %v710 = vsel %vm709, 0, %v708
    %v711 = vsub.s32 32, %v710
    %v712 = vshll.u32 %v703, %v710
    %v713 = vshrl.u32 %v695, %v711
    %v714 = vor.u32 %v712, %v713
    %v715 = vsub.s32 4294967266, %v710
    %v716 = vadd.s32 %v715, 127
    %v717 = vshll.u32 %v716, 23
    %v718 = vor.u32 4788187, %v717
    %v719 = vand.u32 2147483647, %v718
    %v721 = vcvt.s32.f32 %v714
    %v722 = vmul.f32 %v721, %v719
    %v723 = vxor.u32 %v722, 2147483648
    %v724 = vsel %vm641, %v723, %v722
    %v725 = vsub.s32 4, %v701
    %v726 = vsel %vm641, %v725, %v701
    %v727 = vsel %vm640, %v108, %v724
    %v728 = vsel %vm640, 0, %v726
    %v729 = vcosq.f32.pop %v727
    %v730 = vsinq.f32.pop %v727
    %vm731 = vweird.f32 %v108
    %v732 = vadd.s32 %v728, 3
    %v733 = vand.u32 %v732, 3
    %vm734 = vcmp.lt.s32.totalorder %v733, 2
    %vm735 = vcmp.eq.s32.totalorder %v733, 0
    %v736 = vxor.u32 %v730, 2147483648
    %v737 = vsel %vm735, %v729, %v736
    %vm738 = vcmp.eq.s32.totalorder %v733, 2
    %v739 = vxor.u32 %v729, 2147483648
    %v740 = vsel %vm738, %v739, %v730
    %v741 = vsel %vm734, %v737, %v740
    %v742 = vsel %vm731, nan, %v741
    %v743 = vand.u32 2147483647, %v109
    %vm744 = vcmp.le.f32.partialorder %v743, 0.7853982
    %vm745 = vcmp.lt.s32.totalorder %v109, 0
    %v746 = vand.u32 %v109, 2139095040
    %v747 = vshrl.u32 %v746, 23
    %v748 = vsub.s32 %v747, 127
    %v749 = vand.u32 2147483647, %v109
    %v750 = vand.u32 %v749, 8388607
    %v751 = vor.u32 %v750, 8388608
    %v752 = vsub.s32 0, %v751
    %v753 = vadd.s32 %v748, 1
    %vm754 = vcmp.gt.s32.totalorder %v753, 0
    %v755 = vsel %vm754, %v753, 0
    %v756 = vshrl.u32 %v755, 5
    %v757 = vand.u32 %v755, 31
    %v758 = vsub.s32 32, %v757
    %v759 = vshrl.u32 683565275, %v758
    %v760 = vshll.u32 683565275, %v757
    %v761 = vshrl.u32 2475754826, %v758
    %v762 = vor.u32 %v760, %v761
    %v763 = vshll.u32 2475754826, %v757
    %v764 = vshrl.u32 2131351028, %v758
    %v765 = vor.u32 %v763, %v764
    %v766 = vshll.u32 2131351028, %v757
    %v767 = vshrl.u32 2102212464, %v758
    %v768 = vor.u32 %v766, %v767
    %v769 = vshll.u32 2102212464, %v757
    %v770 = vshrl.u32 920167782, %v758
    %v771 = vor.u32 %v769, %v770
    %v772 = vshll.u32 920167782, %v757
    %v773 = vshrl.u32 1326507024, %v758
    %v774 = vor.u32 %v772, %v773
    %vm775 = vcmp.lt.s32.totalorder %v756, 1
    %vm776 = vcmp.lt.s32.totalorder %v756, 2
    %vm777 = vcmp.lt.s32.totalorder %v756, 3
    %vm778 = vcmp.lt.s32.totalorder %v756, 4
    %v779 = vsel %vm775, %v759, %v762
    %v780 = vsel %vm778, %v768, 2102212464
    %v781 = vsel %vm777, %v765, %v780
    %v782 = vsel %vm776, %v779, %v781
    %v783 = vsel %vm775, %v762, %v765
    %v784 = vsel %vm778, %v771, 920167782
    %v785 = vsel %vm777, %v768, %v784
    %v786 = vsel %vm776, %v783, %v785
    %v787 = vsel %vm775, %v765, %v768
    %v788 = vsel %vm778, %v774, 1326507024
    %v789 = vsel %vm777, %v771, %v788
    %v790 = vsel %vm776, %v787, %v789
    %v791 = vshll.u32 %v751, 8
    %v792 = vmul.u32.u64.compose %v791, %v790
    %v793 = vextract.low.u32 %v792
    %v794 = vextract.high.u32 %v792
    %v795 = vmul.u32.u64.compose %v791, %v786
    %v796 = vextract.low.u32 %v795
    %v797 = vextract.high.u32 %v795
    %v798 = vmul.u32 %v791, %v782
    %v799 = vadd.s32 %v794, %v796
    %vm800 = vc.u32 %v794, %v796
    %v801 = vadd.s32 %v797, 1
    %v802 = vsel %vm800, %v801, %v797
    %v803 = vadd.s32 %v798, %v802
    %v804 = vadd.s32 %v803, 536870912
    %v805 = vshrl.u32 %v804, 30
    %v806 = vshll.u32 %v805, 30
    %v807 = vsub.s32 %v803, %v806
    %vm808 = vcmp.lt.s32.totalorder %v807, 0
    %v809 = vsub.s32 0, %v807
    %v810 = vsel %vm808, %v809, %v807
    %v811 = vclz %v810
    %v812 = vsub.s32 %v811, 2
    %vm813 = vcmp.gt.s32.totalorder 0, %v812
    %v814 = vsel %vm813, 0, %v812
    %v815 = vsub.s32 32, %v814
    %v816 = vshll.u32 %v807, %v814
    %v817 = vshrl.u32 %v799, %v815
    %v818 = vor.u32 %v816, %v817
    %v819 = vsub.s32 4294967266, %v814
    %v820 = vadd.s32 %v819, 127
    %v821 = vshll.u32 %v820, 23
    %v822 = vor.u32 4788187, %v821
    %v823 = vand.u32 2147483647, %v822
    %v825 = vcvt.s32.f32 %v818
    %v826 = vmul.f32 %v825, %v823
    %v827 = vxor.u32 %v826, 2147483648
    %v828 = vsel %vm745, %v827, %v826
    %v829 = vsub.s32 4, %v805
    %v830 = vsel %vm745, %v829, %v805
    %v831 = vsel %vm744, %v109, %v828
    %v832 = vsel %vm744, 0, %v830
    %v833 = vcosq.f32.pop %v831
    %v834 = vsinq.f32.pop %v831
    %vm835 = vweird.f32 %v109
    %v836 = vadd.s32 %v832, 3
    %v837 = vand.u32 %v836, 3
    %vm838 = vcmp.lt.s32.totalorder %v837, 2
    %vm839 = vcmp.eq.s32.totalorder %v837, 0
    %v840 = vxor.u32 %v834, 2147483648
    %v841 = vsel %vm839, %v833, %v840
    %vm842 = vcmp.eq.s32.totalorder %v837, 2
    %v843 = vxor.u32 %v833, 2147483648
    %v844 = vsel %vm842, %v843, %v834
    %v845 = vsel %vm838, %v841, %v844
    %v846 = vsel %vm835, nan, %v845
    %v847 = vand.u32 2147483647, %v110
    %vm848 = vcmp.le.f32.partialorder %v847, 0.7853982
    %vm849 = vcmp.lt.s32.totalorder %v110, 0
    %v850 = vand.u32 %v110, 2139095040
    %v851 = vshrl.u32 %v850, 23
    %v852 = vsub.s32 %v851, 127
    %v853 = vand.u32 2147483647, %v110
    %v854 = vand.u32 %v853, 8388607
    %v855 = vor.u32 %v854, 8388608
    %v856 = vsub.s32 0, %v855
    %v857 = vadd.s32 %v852, 1
    %vm858 = vcmp.gt.s32.totalorder %v857, 0
    %v859 = vsel %vm858, %v857, 0
    %v860 = vshrl.u32 %v859, 5
    %v861 = vand.u32 %v859, 31
    %v862 = vsub.s32 32, %v861
    %v863 = vshrl.u32 683565275, %v862
    %v864 = vshll.u32 683565275, %v861
    %v865 = vshrl.u32 2475754826, %v862
    %v866 = vor.u32 %v864, %v865
    %v867 = vshll.u32 2475754826, %v861
    %v868 = vshrl.u32 2131351028, %v862
    %v869 = vor.u32 %v867, %v868
    %v870 = vshll.u32 2131351028, %v861
    %v871 = vshrl.u32 2102212464, %v862
    %v872 = vor.u32 %v870, %v871
    %v873 = vshll.u32 2102212464, %v861
    %v874 = vshrl.u32 920167782, %v862
    %v875 = vor.u32 %v873, %v874
    %v876 = vshll.u32 920167782, %v861
    %v877 = vshrl.u32 1326507024, %v862
    %v878 = vor.u32 %v876, %v877
    %vm879 = vcmp.lt.s32.totalorder %v860, 1
    %vm880 = vcmp.lt.s32.totalorder %v860, 2
    %vm881 = vcmp.lt.s32.totalorder %v860, 3
    %vm882 = vcmp.lt.s32.totalorder %v860, 4
    %v883 = vsel %vm879, %v863, %v866
    %v884 = vsel %vm882, %v872, 2102212464
    %v885 = vsel %vm881, %v869, %v884
    %v886 = vsel %vm880, %v883, %v885
    %v887 = vsel %vm879, %v866, %v869
    %v888 = vsel %vm882, %v875, 920167782
    %v889 = vsel %vm881, %v872, %v888
    %v890 = vsel %vm880, %v887, %v889
    %v891 = vsel %vm879, %v869, %v872
    %v892 = vsel %vm882, %v878, 1326507024
    %v893 = vsel %vm881, %v875, %v892
    %v894 = vsel %vm880, %v891, %v893
    %v895 = vshll.u32 %v855, 8
    %v896 = vmul.u32.u64.compose %v895, %v894
    %v897 = vextract.low.u32 %v896
    %v898 = vextract.high.u32 %v896
    %v899 = vmul.u32.u64.compose %v895, %v890
    %v900 = vextract.low.u32 %v899
    %v901 = vextract.high.u32 %v899
    %v902 = vmul.u32 %v895, %v886
    %v903 = vadd.s32 %v898, %v900
    %vm904 = vc.u32 %v898, %v900
    %v905 = vadd.s32 %v901, 1
    %v906 = vsel %vm904, %v905, %v901
    %v907 = vadd.s32 %v902, %v906
    %v908 = vadd.s32 %v907, 536870912
    %v909 = vshrl.u32 %v908, 30
    %v910 = vshll.u32 %v909, 30
    %v911 = vsub.s32 %v907, %v910
    %vm912 = vcmp.lt.s32.totalorder %v911, 0
    %v913 = vsub.s32 0, %v911
    %v914 = vsel %vm912, %v913, %v911
    %v915 = vclz %v914
    %v916 = vsub.s32 %v915, 2
    %vm917 = vcmp.gt.s32.totalorder 0, %v916
    %v918 = vsel %vm917, 0, %v916
    %v919 = vsub.s32 32, %v918
    %v920 = vshll.u32 %v911, %v918
    %v921 = vshrl.u32 %v903, %v919
    %v922 = vor.u32 %v920, %v921
    %v923 = vsub.s32 4294967266, %v918
    %v924 = vadd.s32 %v923, 127
    %v925 = vshll.u32 %v924, 23
    %v926 = vor.u32 4788187, %v925
    %v927 = vand.u32 2147483647, %v926
    %v929 = vcvt.s32.f32 %v922
    %v930 = vmul.f32 %v929, %v927
    %v931 = vxor.u32 %v930, 2147483648
    %v932 = vsel %vm849, %v931, %v930
    %v933 = vsub.s32 4, %v909
    %v934 = vsel %vm849, %v933, %v909
    %v935 = vsel %vm848, %v110, %v932
    %v936 = vsel %vm848, 0, %v934
    %v937 = vcosq.f32.pop %v935
    %v938 = vsinq.f32.pop %v935
    %vm939 = vweird.f32 %v110
    %v940 = vadd.s32 %v936, 3
    %v941 = vand.u32 %v940, 3
    %vm942 = vcmp.lt.s32.totalorder %v941, 2
    %vm943 = vcmp.eq.s32.totalorder %v941, 0
    %v944 = vxor.u32 %v938, 2147483648
    %v945 = vsel %vm943, %v937, %v944
    %vm946 = vcmp.eq.s32.totalorder %v941, 2
    %v947 = vxor.u32 %v937, 2147483648
    %v948 = vsel %vm946, %v947, %v938
    %v949 = vsel %vm942, %v945, %v948
    %v950 = vsel %vm939, nan, %v949
    %v951 = vand.u32 2147483647, %v111
    %vm952 = vcmp.le.f32.partialorder %v951, 0.7853982
    %vm953 = vcmp.lt.s32.totalorder %v111, 0
    %v954 = vand.u32 %v111, 2139095040
    %v955 = vshrl.u32 %v954, 23
    %v956 = vsub.s32 %v955, 127
    %v957 = vand.u32 2147483647, %v111
    %v958 = vand.u32 %v957, 8388607
    %v959 = vor.u32 %v958, 8388608
    %v960 = vsub.s32 0, %v959
    %v961 = vadd.s32 %v956, 1
    %vm962 = vcmp.gt.s32.totalorder %v961, 0
    %v963 = vsel %vm962, %v961, 0
    %v964 = vshrl.u32 %v963, 5
    %v965 = vand.u32 %v963, 31
    %v966 = vsub.s32 32, %v965
    %v967 = vshrl.u32 683565275, %v966
    %v968 = vshll.u32 683565275, %v965
    %v969 = vshrl.u32 2475754826, %v966
    %v970 = vor.u32 %v968, %v969
    %v971 = vshll.u32 2475754826, %v965
    %v972 = vshrl.u32 2131351028, %v966
    %v973 = vor.u32 %v971, %v972
    %v974 = vshll.u32 2131351028, %v965
    %v975 = vshrl.u32 2102212464, %v966
    %v976 = vor.u32 %v974, %v975
    %v977 = vshll.u32 2102212464, %v965
    %v978 = vshrl.u32 920167782, %v966
    %v979 = vor.u32 %v977, %v978
    %v980 = vshll.u32 920167782, %v965
    %v981 = vshrl.u32 1326507024, %v966
    %v982 = vor.u32 %v980, %v981
    %vm983 = vcmp.lt.s32.totalorder %v964, 1
    %vm984 = vcmp.lt.s32.totalorder %v964, 2
    %vm985 = vcmp.lt.s32.totalorder %v964, 3
    %vm986 = vcmp.lt.s32.totalorder %v964, 4
    %v987 = vsel %vm983, %v967, %v970
    %v988 = vsel %vm986, %v976, 2102212464
    %v989 = vsel %vm985, %v973, %v988
    %v990 = vsel %vm984, %v987, %v989
    %v991 = vsel %vm983, %v970, %v973
    %v992 = vsel %vm986, %v979, 920167782
    %v993 = vsel %vm985, %v976, %v992
    %v994 = vsel %vm984, %v991, %v993
    %v995 = vsel %vm983, %v973, %v976
    %v996 = vsel %vm986, %v982, 1326507024
    %v997 = vsel %vm985, %v979, %v996
    %v998 = vsel %vm984, %v995, %v997
    %v999 = vshll.u32 %v959, 8
    %v1000 = vmul.u32.u64.compose %v999, %v998
    %v1001 = vextract.low.u32 %v1000
    %v1002 = vextract.high.u32 %v1000
    %v1003 = vmul.u32.u64.compose %v999, %v994
    %v1004 = vextract.low.u32 %v1003
    %v1005 = vextract.high.u32 %v1003
    %v1006 = vmul.u32 %v999, %v990
    %v1007 = vadd.s32 %v1002, %v1004
    %vm1008 = vc.u32 %v1002, %v1004
    %v1009 = vadd.s32 %v1005, 1
    %v1010 = vsel %vm1008, %v1009, %v1005
    %v1011 = vadd.s32 %v1006, %v1010
    %v1012 = vadd.s32 %v1011, 536870912
    %v1013 = vshrl.u32 %v1012, 30
    %v1014 = vshll.u32 %v1013, 30
    %v1015 = vsub.s32 %v1011, %v1014
    %vm1016 = vcmp.lt.s32.totalorder %v1015, 0
    %v1017 = vsub.s32 0, %v1015
    %v1018 = vsel %vm1016, %v1017, %v1015
    %v1019 = vclz %v1018
    %v1020 = vsub.s32 %v1019, 2
    %vm1021 = vcmp.gt.s32.totalorder 0, %v1020
    %v1022 = vsel %vm1021, 0, %v1020
    %v1023 = vsub.s32 32, %v1022
    %v1024 = vshll.u32 %v1015, %v1022
    %v1025 = vshrl.u32 %v1007, %v1023
    %v1026 = vor.u32 %v1024, %v1025
    %v1027 = vsub.s32 4294967266, %v1022
    %v1028 = vadd.s32 %v1027, 127
    %v1029 = vshll.u32 %v1028, 23
    %v1030 = vor.u32 4788187, %v1029
    %v1031 = vand.u32 2147483647, %v1030
    %v1033 = vcvt.s32.f32 %v1026
    %v1034 = vmul.f32 %v1033, %v1031
    %v1035 = vxor.u32 %v1034, 2147483648
    %v1036 = vsel %vm953, %v1035, %v1034
    %v1037 = vsub.s32 4, %v1013
    %v1038 = vsel %vm953, %v1037, %v1013
    %v1039 = vsel %vm952, %v111, %v1036
    %v1040 = vsel %vm952, 0, %v1038
    %v1041 = vcosq.f32.pop %v1039
    %v1042 = vsinq.f32.pop %v1039
    %vm1043 = vweird.f32 %v111
    %v1044 = vadd.s32 %v1040, 3
    %v1045 = vand.u32 %v1044, 3
    %vm1046 = vcmp.lt.s32.totalorder %v1045, 2
    %vm1047 = vcmp.eq.s32.totalorder %v1045, 0
    %v1048 = vxor.u32 %v1042, 2147483648
    %v1049 = vsel %vm1047, %v1041, %v1048
    %vm1050 = vcmp.eq.s32.totalorder %v1045, 2
    %v1051 = vxor.u32 %v1041, 2147483648
    %v1052 = vsel %vm1050, %v1051, %v1042
    %v1053 = vsel %vm1046, %v1049, %v1052
    %v1054 = vsel %vm1043, nan, %v1053
    %v1055 = vand.u32 2147483647, %v112
    %vm1056 = vcmp.le.f32.partialorder %v1055, 0.7853982
    %vm1057 = vcmp.lt.s32.totalorder %v112, 0
    %v1058 = vand.u32 %v112, 2139095040
    %v1059 = vshrl.u32 %v1058, 23
    %v1060 = vsub.s32 %v1059, 127
    %v1061 = vand.u32 2147483647, %v112
    %v1062 = vand.u32 %v1061, 8388607
    %v1063 = vor.u32 %v1062, 8388608
    %v1064 = vsub.s32 0, %v1063
    %v1065 = vadd.s32 %v1060, 1
    %vm1066 = vcmp.gt.s32.totalorder %v1065, 0
    %v1067 = vsel %vm1066, %v1065, 0
    %v1068 = vshrl.u32 %v1067, 5
    %v1069 = vand.u32 %v1067, 31
    %v1070 = vsub.s32 32, %v1069
    %v1071 = vshrl.u32 683565275, %v1070
    %v1072 = vshll.u32 683565275, %v1069
    %v1073 = vshrl.u32 2475754826, %v1070
    %v1074 = vor.u32 %v1072, %v1073
    %v1075 = vshll.u32 2475754826, %v1069
    %v1076 = vshrl.u32 2131351028, %v1070
    %v1077 = vor.u32 %v1075, %v1076
    %v1078 = vshll.u32 2131351028, %v1069
    %v1079 = vshrl.u32 2102212464, %v1070
    %v1080 = vor.u32 %v1078, %v1079
    %v1081 = vshll.u32 2102212464, %v1069
    %v1082 = vshrl.u32 920167782, %v1070
    %v1083 = vor.u32 %v1081, %v1082
    %v1084 = vshll.u32 920167782, %v1069
    %v1085 = vshrl.u32 1326507024, %v1070
    %v1086 = vor.u32 %v1084, %v1085
    %vm1087 = vcmp.lt.s32.totalorder %v1068, 1
    %vm1088 = vcmp.lt.s32.totalorder %v1068, 2
    %vm1089 = vcmp.lt.s32.totalorder %v1068, 3
    %vm1090 = vcmp.lt.s32.totalorder %v1068, 4
    %v1091 = vsel %vm1087, %v1071, %v1074
    %v1092 = vsel %vm1090, %v1080, 2102212464
    %v1093 = vsel %vm1089, %v1077, %v1092
    %v1094 = vsel %vm1088, %v1091, %v1093
    %v1095 = vsel %vm1087, %v1074, %v1077
    %v1096 = vsel %vm1090, %v1083, 920167782
    %v1097 = vsel %vm1089, %v1080, %v1096
    %v1098 = vsel %vm1088, %v1095, %v1097
    %v1099 = vsel %vm1087, %v1077, %v1080
    %v1100 = vsel %vm1090, %v1086, 1326507024
    %v1101 = vsel %vm1089, %v1083, %v1100
    %v1102 = vsel %vm1088, %v1099, %v1101
    %v1103 = vshll.u32 %v1063, 8
    %v1104 = vmul.u32.u64.compose %v1103, %v1102
    %v1105 = vextract.low.u32 %v1104
    %v1106 = vextract.high.u32 %v1104
    %v1107 = vmul.u32.u64.compose %v1103, %v1098
    %v1108 = vextract.low.u32 %v1107
    %v1109 = vextract.high.u32 %v1107
    %v1110 = vmul.u32 %v1103, %v1094
    %v1111 = vadd.s32 %v1106, %v1108
    %vm1112 = vc.u32 %v1106, %v1108
    %v1113 = vadd.s32 %v1109, 1
    %v1114 = vsel %vm1112, %v1113, %v1109
    %v1115 = vadd.s32 %v1110, %v1114
    %v1116 = vadd.s32 %v1115, 536870912
    %v1117 = vshrl.u32 %v1116, 30
    %v1118 = vshll.u32 %v1117, 30
    %v1119 = vsub.s32 %v1115, %v1118
    %vm1120 = vcmp.lt.s32.totalorder %v1119, 0
    %v1121 = vsub.s32 0, %v1119
    %v1122 = vsel %vm1120, %v1121, %v1119
    %v1123 = vclz %v1122
    %v1124 = vsub.s32 %v1123, 2
    %vm1125 = vcmp.gt.s32.totalorder 0, %v1124
    %v1126 = vsel %vm1125, 0, %v1124
    %v1127 = vsub.s32 32, %v1126
    %v1128 = vshll.u32 %v1119, %v1126
    %v1129 = vshrl.u32 %v1111, %v1127
    %v1130 = vor.u32 %v1128, %v1129
    %v1131 = vsub.s32 4294967266, %v1126
    %v1132 = vadd.s32 %v1131, 127
    %v1133 = vshll.u32 %v1132, 23
    %v1134 = vor.u32 4788187, %v1133
    %v1135 = vand.u32 2147483647, %v1134
    %v1137 = vcvt.s32.f32 %v1130
    %v1138 = vmul.f32 %v1137, %v1135
    %v1139 = vxor.u32 %v1138, 2147483648
    %v1140 = vsel %vm1057, %v1139, %v1138
    %v1141 = vsub.s32 4, %v1117
    %v1142 = vsel %vm1057, %v1141, %v1117
    %v1143 = vsel %vm1056, %v112, %v1140
    %v1144 = vsel %vm1056, 0, %v1142
    %v1145 = vcosq.f32.pop %v1143
    %v1146 = vsinq.f32.pop %v1143
    %vm1147 = vweird.f32 %v112
    %v1148 = vadd.s32 %v1144, 3
    %v1149 = vand.u32 %v1148, 3
    %vm1150 = vcmp.lt.s32.totalorder %v1149, 2
    %vm1151 = vcmp.eq.s32.totalorder %v1149, 0
    %v1152 = vxor.u32 %v1146, 2147483648
    %v1153 = vsel %vm1151, %v1145, %v1152
    %vm1154 = vcmp.eq.s32.totalorder %v1149, 2
    %v1155 = vxor.u32 %v1145, 2147483648
    %v1156 = vsel %vm1154, %v1155, %v1146
    %v1157 = vsel %vm1150, %v1153, %v1156
    %v1158 = vsel %vm1147, nan, %v1157
    %v1159 = vand.u32 2147483647, %v113
    %vm1160 = vcmp.le.f32.partialorder %v1159, 0.7853982
    %vm1161 = vcmp.lt.s32.totalorder %v113, 0
    %v1162 = vand.u32 %v113, 2139095040
    %v1163 = vshrl.u32 %v1162, 23
    %v1164 = vsub.s32 %v1163, 127
    %v1165 = vand.u32 2147483647, %v113
    %v1166 = vand.u32 %v1165, 8388607
    %v1167 = vor.u32 %v1166, 8388608
    %v1168 = vsub.s32 0, %v1167
    %v1169 = vadd.s32 %v1164, 1
    %vm1170 = vcmp.gt.s32.totalorder %v1169, 0
    %v1171 = vsel %vm1170, %v1169, 0
    %v1172 = vshrl.u32 %v1171, 5
    %v1173 = vand.u32 %v1171, 31
    %v1174 = vsub.s32 32, %v1173
    %v1175 = vshrl.u32 683565275, %v1174
    %v1176 = vshll.u32 683565275, %v1173
    %v1177 = vshrl.u32 2475754826, %v1174
    %v1178 = vor.u32 %v1176, %v1177
    %v1179 = vshll.u32 2475754826, %v1173
    %v1180 = vshrl.u32 2131351028, %v1174
    %v1181 = vor.u32 %v1179, %v1180
    %v1182 = vshll.u32 2131351028, %v1173
    %v1183 = vshrl.u32 2102212464, %v1174
    %v1184 = vor.u32 %v1182, %v1183
    %v1185 = vshll.u32 2102212464, %v1173
    %v1186 = vshrl.u32 920167782, %v1174
    %v1187 = vor.u32 %v1185, %v1186
    %v1188 = vshll.u32 920167782, %v1173
    %v1189 = vshrl.u32 1326507024, %v1174
    %v1190 = vor.u32 %v1188, %v1189
    %vm1191 = vcmp.lt.s32.totalorder %v1172, 1
    %vm1192 = vcmp.lt.s32.totalorder %v1172, 2
    %vm1193 = vcmp.lt.s32.totalorder %v1172, 3
    %vm1194 = vcmp.lt.s32.totalorder %v1172, 4
    %v1195 = vsel %vm1191, %v1175, %v1178
    %v1196 = vsel %vm1194, %v1184, 2102212464
    %v1197 = vsel %vm1193, %v1181, %v1196
    %v1198 = vsel %vm1192, %v1195, %v1197
    %v1199 = vsel %vm1191, %v1178, %v1181
    %v1200 = vsel %vm1194, %v1187, 920167782
    %v1201 = vsel %vm1193, %v1184, %v1200
    %v1202 = vsel %vm1192, %v1199, %v1201
    %v1203 = vsel %vm1191, %v1181, %v1184
    %v1204 = vsel %vm1194, %v1190, 1326507024
    %v1205 = vsel %vm1193, %v1187, %v1204
    %v1206 = vsel %vm1192, %v1203, %v1205
    %v1207 = vshll.u32 %v1167, 8
    %v1208 = vmul.u32.u64.compose %v1207, %v1206
    %v1209 = vextract.low.u32 %v1208
    %v1210 = vextract.high.u32 %v1208
    %v1211 = vmul.u32.u64.compose %v1207, %v1202
    %v1212 = vextract.low.u32 %v1211
    %v1213 = vextract.high.u32 %v1211
    %v1214 = vmul.u32 %v1207, %v1198
    %v1215 = vadd.s32 %v1210, %v1212
    %vm1216 = vc.u32 %v1210, %v1212
    %v1217 = vadd.s32 %v1213, 1
    %v1218 = vsel %vm1216, %v1217, %v1213
    %v1219 = vadd.s32 %v1214, %v1218
    %v1220 = vadd.s32 %v1219, 536870912
    %v1221 = vshrl.u32 %v1220, 30
    %v1222 = vshll.u32 %v1221, 30
    %v1223 = vsub.s32 %v1219, %v1222
    %vm1224 = vcmp.lt.s32.totalorder %v1223, 0
    %v1225 = vsub.s32 0, %v1223
    %v1226 = vsel %vm1224, %v1225, %v1223
    %v1227 = vclz %v1226
    %v1228 = vsub.s32 %v1227, 2
    %vm1229 = vcmp.gt.s32.totalorder 0, %v1228
    %v1230 = vsel %vm1229, 0, %v1228
    %v1231 = vsub.s32 32, %v1230
    %v1232 = vshll.u32 %v1223, %v1230
    %v1233 = vshrl.u32 %v1215, %v1231
    %v1234 = vor.u32 %v1232, %v1233
    %v1235 = vsub.s32 4294967266, %v1230
    %v1236 = vadd.s32 %v1235, 127
    %v1237 = vshll.u32 %v1236, 23
    %v1238 = vor.u32 4788187, %v1237
    %v1239 = vand.u32 2147483647, %v1238
    %v1241 = vcvt.s32.f32 %v1234
    %v1242 = vmul.f32 %v1241, %v1239
    %v1243 = vxor.u32 %v1242, 2147483648
    %v1244 = vsel %vm1161, %v1243, %v1242
    %v1245 = vsub.s32 4, %v1221
    %v1246 = vsel %vm1161, %v1245, %v1221
    %v1247 = vsel %vm1160, %v113, %v1244
    %v1248 = vsel %vm1160, 0, %v1246
    %v1249 = vcosq.f32.pop %v1247
    %v1250 = vsinq.f32.pop %v1247
    %vm1251 = vweird.f32 %v113
    %v1252 = vadd.s32 %v1248, 3
    %v1253 = vand.u32 %v1252, 3
    %vm1254 = vcmp.lt.s32.totalorder %v1253, 2
    %vm1255 = vcmp.eq.s32.totalorder %v1253, 0
    %v1256 = vxor.u32 %v1250, 2147483648
    %v1257 = vsel %vm1255, %v1249, %v1256
    %vm1258 = vcmp.eq.s32.totalorder %v1253, 2
    %v1259 = vxor.u32 %v1249, 2147483648
    %v1260 = vsel %vm1258, %v1259, %v1250
    %v1261 = vsel %vm1254, %v1257, %v1260
    %v1262 = vsel %vm1251, nan, %v1261
    %v1263 = vand.u32 2147483647, %v114
    %vm1264 = vcmp.le.f32.partialorder %v1263, 0.7853982
    %vm1265 = vcmp.lt.s32.totalorder %v114, 0
    %v1266 = vand.u32 %v114, 2139095040
    %v1267 = vshrl.u32 %v1266, 23
    %v1268 = vsub.s32 %v1267, 127
    %v1269 = vand.u32 2147483647, %v114
    %v1270 = vand.u32 %v1269, 8388607
    %v1271 = vor.u32 %v1270, 8388608
    %v1272 = vsub.s32 0, %v1271
    %v1273 = vadd.s32 %v1268, 1
    %vm1274 = vcmp.gt.s32.totalorder %v1273, 0
    %v1275 = vsel %vm1274, %v1273, 0
    %v1276 = vshrl.u32 %v1275, 5
    %v1277 = vand.u32 %v1275, 31
    %v1278 = vsub.s32 32, %v1277
    %v1279 = vshrl.u32 683565275, %v1278
    %v1280 = vshll.u32 683565275, %v1277
    %v1281 = vshrl.u32 2475754826, %v1278
    %v1282 = vor.u32 %v1280, %v1281
    %v1283 = vshll.u32 2475754826, %v1277
    %v1284 = vshrl.u32 2131351028, %v1278
    %v1285 = vor.u32 %v1283, %v1284
    %v1286 = vshll.u32 2131351028, %v1277
    %v1287 = vshrl.u32 2102212464, %v1278
    %v1288 = vor.u32 %v1286, %v1287
    %v1289 = vshll.u32 2102212464, %v1277
    %v1290 = vshrl.u32 920167782, %v1278
    %v1291 = vor.u32 %v1289, %v1290
    %v1292 = vshll.u32 920167782, %v1277
    %v1293 = vshrl.u32 1326507024, %v1278
    %v1294 = vor.u32 %v1292, %v1293
    %vm1295 = vcmp.lt.s32.totalorder %v1276, 1
    %vm1296 = vcmp.lt.s32.totalorder %v1276, 2
    %vm1297 = vcmp.lt.s32.totalorder %v1276, 3
    %vm1298 = vcmp.lt.s32.totalorder %v1276, 4
    %v1299 = vsel %vm1295, %v1279, %v1282
    %v1300 = vsel %vm1298, %v1288, 2102212464
    %v1301 = vsel %vm1297, %v1285, %v1300
    %v1302 = vsel %vm1296, %v1299, %v1301
    %v1303 = vsel %vm1295, %v1282, %v1285
    %v1304 = vsel %vm1298, %v1291, 920167782
    %v1305 = vsel %vm1297, %v1288, %v1304
    %v1306 = vsel %vm1296, %v1303, %v1305
    %v1307 = vsel %vm1295, %v1285, %v1288
    %v1308 = vsel %vm1298, %v1294, 1326507024
    %v1309 = vsel %vm1297, %v1291, %v1308
    %v1310 = vsel %vm1296, %v1307, %v1309
    %v1311 = vshll.u32 %v1271, 8
    %v1312 = vmul.u32.u64.compose %v1311, %v1310
    %v1313 = vextract.low.u32 %v1312
    %v1314 = vextract.high.u32 %v1312
    %v1315 = vmul.u32.u64.compose %v1311, %v1306
    %v1316 = vextract.low.u32 %v1315
    %v1317 = vextract.high.u32 %v1315
    %v1318 = vmul.u32 %v1311, %v1302
    %v1319 = vadd.s32 %v1314, %v1316
    %vm1320 = vc.u32 %v1314, %v1316
    %v1321 = vadd.s32 %v1317, 1
    %v1322 = vsel %vm1320, %v1321, %v1317
    %v1323 = vadd.s32 %v1318, %v1322
    %v1324 = vadd.s32 %v1323, 536870912
    %v1325 = vshrl.u32 %v1324, 30
    %v1326 = vshll.u32 %v1325, 30
    %v1327 = vsub.s32 %v1323, %v1326
    %vm1328 = vcmp.lt.s32.totalorder %v1327, 0
    %v1329 = vsub.s32 0, %v1327
    %v1330 = vsel %vm1328, %v1329, %v1327
    %v1331 = vclz %v1330
    %v1332 = vsub.s32 %v1331, 2
    %vm1333 = vcmp.gt.s32.totalorder 0, %v1332
    %v1334 = vsel %vm1333, 0, %v1332
    %v1335 = vsub.s32 32, %v1334
    %v1336 = vshll.u32 %v1327, %v1334
    %v1337 = vshrl.u32 %v1319, %v1335
    %v1338 = vor.u32 %v1336, %v1337
    %v1339 = vsub.s32 4294967266, %v1334
    %v1340 = vadd.s32 %v1339, 127
    %v1341 = vshll.u32 %v1340, 23
    %v1342 = vor.u32 4788187, %v1341
    %v1343 = vand.u32 2147483647, %v1342
    %v1345 = vcvt.s32.f32 %v1338
    %v1346 = vmul.f32 %v1345, %v1343
    %v1347 = vxor.u32 %v1346, 2147483648
    %v1348 = vsel %vm1265, %v1347, %v1346
    %v1349 = vsub.s32 4, %v1325
    %v1350 = vsel %vm1265, %v1349, %v1325
    %v1351 = vsel %vm1264, %v114, %v1348
    %v1352 = vsel %vm1264, 0, %v1350
    %v1353 = vcosq.f32.pop %v1351
    %v1354 = vsinq.f32.pop %v1351
    %vm1355 = vweird.f32 %v114
    %v1356 = vadd.s32 %v1352, 3
    %v1357 = vand.u32 %v1356, 3
    %vm1358 = vcmp.lt.s32.totalorder %v1357, 2
    %vm1359 = vcmp.eq.s32.totalorder %v1357, 0
    %v1360 = vxor.u32 %v1354, 2147483648
    %v1361 = vsel %vm1359, %v1353, %v1360
    %vm1362 = vcmp.eq.s32.totalorder %v1357, 2
    %v1363 = vxor.u32 %v1353, 2147483648
    %v1364 = vsel %vm1362, %v1363, %v1354
    %v1365 = vsel %vm1358, %v1361, %v1364
    %v1366 = vsel %vm1355, nan, %v1365
    %v1367 = vand.u32 2147483647, %v115
    %vm1368 = vcmp.le.f32.partialorder %v1367, 0.7853982
    %vm1369 = vcmp.lt.s32.totalorder %v115, 0
    %v1370 = vand.u32 %v115, 2139095040
    %v1371 = vshrl.u32 %v1370, 23
    %v1372 = vsub.s32 %v1371, 127
    %v1373 = vand.u32 2147483647, %v115
    %v1374 = vand.u32 %v1373, 8388607
    %v1375 = vor.u32 %v1374, 8388608
    %v1376 = vsub.s32 0, %v1375
    %v1377 = vadd.s32 %v1372, 1
    %vm1378 = vcmp.gt.s32.totalorder %v1377, 0
    %v1379 = vsel %vm1378, %v1377, 0
    %v1380 = vshrl.u32 %v1379, 5
    %v1381 = vand.u32 %v1379, 31
    %v1382 = vsub.s32 32, %v1381
    %v1383 = vshrl.u32 683565275, %v1382
    %v1384 = vshll.u32 683565275, %v1381
    %v1385 = vshrl.u32 2475754826, %v1382
    %v1386 = vor.u32 %v1384, %v1385
    %v1387 = vshll.u32 2475754826, %v1381
    %v1388 = vshrl.u32 2131351028, %v1382
    %v1389 = vor.u32 %v1387, %v1388
    %v1390 = vshll.u32 2131351028, %v1381
    %v1391 = vshrl.u32 2102212464, %v1382
    %v1392 = vor.u32 %v1390, %v1391
    %v1393 = vshll.u32 2102212464, %v1381
    %v1394 = vshrl.u32 920167782, %v1382
    %v1395 = vor.u32 %v1393, %v1394
    %v1396 = vshll.u32 920167782, %v1381
    %v1397 = vshrl.u32 1326507024, %v1382
    %v1398 = vor.u32 %v1396, %v1397
    %vm1399 = vcmp.lt.s32.totalorder %v1380, 1
    %vm1400 = vcmp.lt.s32.totalorder %v1380, 2
    %vm1401 = vcmp.lt.s32.totalorder %v1380, 3
    %vm1402 = vcmp.lt.s32.totalorder %v1380, 4
    %v1403 = vsel %vm1399, %v1383, %v1386
    %v1404 = vsel %vm1402, %v1392, 2102212464
    %v1405 = vsel %vm1401, %v1389, %v1404
    %v1406 = vsel %vm1400, %v1403, %v1405
    %v1407 = vsel %vm1399, %v1386, %v1389
    %v1408 = vsel %vm1402, %v1395, 920167782
    %v1409 = vsel %vm1401, %v1392, %v1408
    %v1410 = vsel %vm1400, %v1407, %v1409
    %v1411 = vsel %vm1399, %v1389, %v1392
    %v1412 = vsel %vm1402, %v1398, 1326507024
    %v1413 = vsel %vm1401, %v1395, %v1412
    %v1414 = vsel %vm1400, %v1411, %v1413
    %v1415 = vshll.u32 %v1375, 8
    %v1416 = vmul.u32.u64.compose %v1415, %v1414
    %v1417 = vextract.low.u32 %v1416
    %v1418 = vextract.high.u32 %v1416
    %v1419 = vmul.u32.u64.compose %v1415, %v1410
    %v1420 = vextract.low.u32 %v1419
    %v1421 = vextract.high.u32 %v1419
    %v1422 = vmul.u32 %v1415, %v1406
    %v1423 = vadd.s32 %v1418, %v1420
    %vm1424 = vc.u32 %v1418, %v1420
    %v1425 = vadd.s32 %v1421, 1
    %v1426 = vsel %vm1424, %v1425, %v1421
    %v1427 = vadd.s32 %v1422, %v1426
    %v1428 = vadd.s32 %v1427, 536870912
    %v1429 = vshrl.u32 %v1428, 30
    %v1430 = vshll.u32 %v1429, 30
    %v1431 = vsub.s32 %v1427, %v1430
    %vm1432 = vcmp.lt.s32.totalorder %v1431, 0
    %v1433 = vsub.s32 0, %v1431
    %v1434 = vsel %vm1432, %v1433, %v1431
    %v1435 = vclz %v1434
    %v1436 = vsub.s32 %v1435, 2
    %vm1437 = vcmp.gt.s32.totalorder 0, %v1436
    %v1438 = vsel %vm1437, 0, %v1436
    %v1439 = vsub.s32 32, %v1438
    %v1440 = vshll.u32 %v1431, %v1438
    %v1441 = vshrl.u32 %v1423, %v1439
    %v1442 = vor.u32 %v1440, %v1441
    %v1443 = vsub.s32 4294967266, %v1438
    %v1444 = vadd.s32 %v1443, 127
    %v1445 = vshll.u32 %v1444, 23
    %v1446 = vor.u32 4788187, %v1445
    %v1447 = vand.u32 2147483647, %v1446
    %v1449 = vcvt.s32.f32 %v1442
    %v1450 = vmul.f32 %v1449, %v1447
    %v1451 = vxor.u32 %v1450, 2147483648
    %v1452 = vsel %vm1369, %v1451, %v1450
    %v1453 = vsub.s32 4, %v1429
    %v1454 = vsel %vm1369, %v1453, %v1429
    %v1455 = vsel %vm1368, %v115, %v1452
    %v1456 = vsel %vm1368, 0, %v1454
    %v1457 = vcosq.f32.pop %v1455
    %v1458 = vsinq.f32.pop %v1455
    %vm1459 = vweird.f32 %v115
    %v1460 = vadd.s32 %v1456, 3
    %v1461 = vand.u32 %v1460, 3
    %vm1462 = vcmp.lt.s32.totalorder %v1461, 2
    %vm1463 = vcmp.eq.s32.totalorder %v1461, 0
    %v1464 = vxor.u32 %v1458, 2147483648
    %v1465 = vsel %vm1463, %v1457, %v1464
    %vm1466 = vcmp.eq.s32.totalorder %v1461, 2
    %v1467 = vxor.u32 %v1457, 2147483648
    %v1468 = vsel %vm1466, %v1467, %v1458
    %v1469 = vsel %vm1462, %v1465, %v1468
    %v1470 = vsel %vm1459, nan, %v1469
    %v1471 = vand.u32 2147483647, %v116
    %vm1472 = vcmp.le.f32.partialorder %v1471, 0.7853982
    %vm1473 = vcmp.lt.s32.totalorder %v116, 0
    %v1474 = vand.u32 %v116, 2139095040
    %v1475 = vshrl.u32 %v1474, 23
    %v1476 = vsub.s32 %v1475, 127
    %v1477 = vand.u32 2147483647, %v116
    %v1478 = vand.u32 %v1477, 8388607
    %v1479 = vor.u32 %v1478, 8388608
    %v1480 = vsub.s32 0, %v1479
    %v1481 = vadd.s32 %v1476, 1
    %vm1482 = vcmp.gt.s32.totalorder %v1481, 0
    %v1483 = vsel %vm1482, %v1481, 0
    %v1484 = vshrl.u32 %v1483, 5
    %v1485 = vand.u32 %v1483, 31
    %v1486 = vsub.s32 32, %v1485
    %v1487 = vshrl.u32 683565275, %v1486
    %v1488 = vshll.u32 683565275, %v1485
    %v1489 = vshrl.u32 2475754826, %v1486
    %v1490 = vor.u32 %v1488, %v1489
    %v1491 = vshll.u32 2475754826, %v1485
    %v1492 = vshrl.u32 2131351028, %v1486
    %v1493 = vor.u32 %v1491, %v1492
    %v1494 = vshll.u32 2131351028, %v1485
    %v1495 = vshrl.u32 2102212464, %v1486
    %v1496 = vor.u32 %v1494, %v1495
    %v1497 = vshll.u32 2102212464, %v1485
    %v1498 = vshrl.u32 920167782, %v1486
    %v1499 = vor.u32 %v1497, %v1498
    %v1500 = vshll.u32 920167782, %v1485
    %v1501 = vshrl.u32 1326507024, %v1486
    %v1502 = vor.u32 %v1500, %v1501
    %vm1503 = vcmp.lt.s32.totalorder %v1484, 1
    %vm1504 = vcmp.lt.s32.totalorder %v1484, 2
    %vm1505 = vcmp.lt.s32.totalorder %v1484, 3
    %vm1506 = vcmp.lt.s32.totalorder %v1484, 4
    %v1507 = vsel %vm1503, %v1487, %v1490
    %v1508 = vsel %vm1506, %v1496, 2102212464
    %v1509 = vsel %vm1505, %v1493, %v1508
    %v1510 = vsel %vm1504, %v1507, %v1509
    %v1511 = vsel %vm1503, %v1490, %v1493
    %v1512 = vsel %vm1506, %v1499, 920167782
    %v1513 = vsel %vm1505, %v1496, %v1512
    %v1514 = vsel %vm1504, %v1511, %v1513
    %v1515 = vsel %vm1503, %v1493, %v1496
    %v1516 = vsel %vm1506, %v1502, 1326507024
    %v1517 = vsel %vm1505, %v1499, %v1516
    %v1518 = vsel %vm1504, %v1515, %v1517
    %v1519 = vshll.u32 %v1479, 8
    %v1520 = vmul.u32.u64.compose %v1519, %v1518
    %v1521 = vextract.low.u32 %v1520
    %v1522 = vextract.high.u32 %v1520
    %v1523 = vmul.u32.u64.compose %v1519, %v1514
    %v1524 = vextract.low.u32 %v1523
    %v1525 = vextract.high.u32 %v1523
    %v1526 = vmul.u32 %v1519, %v1510
    %v1527 = vadd.s32 %v1522, %v1524
    %vm1528 = vc.u32 %v1522, %v1524
    %v1529 = vadd.s32 %v1525, 1
    %v1530 = vsel %vm1528, %v1529, %v1525
    %v1531 = vadd.s32 %v1526, %v1530
    %v1532 = vadd.s32 %v1531, 536870912
    %v1533 = vshrl.u32 %v1532, 30
    %v1534 = vshll.u32 %v1533, 30
    %v1535 = vsub.s32 %v1531, %v1534
    %vm1536 = vcmp.lt.s32.totalorder %v1535, 0
    %v1537 = vsub.s32 0, %v1535
    %v1538 = vsel %vm1536, %v1537, %v1535
    %v1539 = vclz %v1538
    %v1540 = vsub.s32 %v1539, 2
    %vm1541 = vcmp.gt.s32.totalorder 0, %v1540
    %v1542 = vsel %vm1541, 0, %v1540
    %v1543 = vsub.s32 32, %v1542
    %v1544 = vshll.u32 %v1535, %v1542
    %v1545 = vshrl.u32 %v1527, %v1543
    %v1546 = vor.u32 %v1544, %v1545
    %v1547 = vsub.s32 4294967266, %v1542
    %v1548 = vadd.s32 %v1547, 127
    %v1549 = vshll.u32 %v1548, 23
    %v1550 = vor.u32 4788187, %v1549
    %v1551 = vand.u32 2147483647, %v1550
    %v1553 = vcvt.s32.f32 %v1546
    %v1554 = vmul.f32 %v1553, %v1551
    %v1555 = vxor.u32 %v1554, 2147483648
    %v1556 = vsel %vm1473, %v1555, %v1554
    %v1557 = vsub.s32 4, %v1533
    %v1558 = vsel %vm1473, %v1557, %v1533
    %v1559 = vsel %vm1472, %v116, %v1556
    %v1560 = vsel %vm1472, 0, %v1558
    %v1561 = vcosq.f32.pop %v1559
    %v1562 = vsinq.f32.pop %v1559
    %vm1563 = vweird.f32 %v116
    %v1564 = vadd.s32 %v1560, 3
    %v1565 = vand.u32 %v1564, 3
    %vm1566 = vcmp.lt.s32.totalorder %v1565, 2
    %vm1567 = vcmp.eq.s32.totalorder %v1565, 0
    %v1568 = vxor.u32 %v1562, 2147483648
    %v1569 = vsel %vm1567, %v1561, %v1568
    %vm1570 = vcmp.eq.s32.totalorder %v1565, 2
    %v1571 = vxor.u32 %v1561, 2147483648
    %v1572 = vsel %vm1570, %v1571, %v1562
    %v1573 = vsel %vm1566, %v1569, %v1572
    %v1574 = vsel %vm1563, nan, %v1573
    %v1575 = vand.u32 2147483647, %v117
    %vm1576 = vcmp.le.f32.partialorder %v1575, 0.7853982
    %vm1577 = vcmp.lt.s32.totalorder %v117, 0
    %v1578 = vand.u32 %v117, 2139095040
    %v1579 = vshrl.u32 %v1578, 23
    %v1580 = vsub.s32 %v1579, 127
    %v1581 = vand.u32 2147483647, %v117
    %v1582 = vand.u32 %v1581, 8388607
    %v1583 = vor.u32 %v1582, 8388608
    %v1584 = vsub.s32 0, %v1583
    %v1585 = vadd.s32 %v1580, 1
    %vm1586 = vcmp.gt.s32.totalorder %v1585, 0
    %v1587 = vsel %vm1586, %v1585, 0
    %v1588 = vshrl.u32 %v1587, 5
    %v1589 = vand.u32 %v1587, 31
    %v1590 = vsub.s32 32, %v1589
    %v1591 = vshrl.u32 683565275, %v1590
    %v1592 = vshll.u32 683565275, %v1589
    %v1593 = vshrl.u32 2475754826, %v1590
    %v1594 = vor.u32 %v1592, %v1593
    %v1595 = vshll.u32 2475754826, %v1589
    %v1596 = vshrl.u32 2131351028, %v1590
    %v1597 = vor.u32 %v1595, %v1596
    %v1598 = vshll.u32 2131351028, %v1589
    %v1599 = vshrl.u32 2102212464, %v1590
    %v1600 = vor.u32 %v1598, %v1599
    %v1601 = vshll.u32 2102212464, %v1589
    %v1602 = vshrl.u32 920167782, %v1590
    %v1603 = vor.u32 %v1601, %v1602
    %v1604 = vshll.u32 920167782, %v1589
    %v1605 = vshrl.u32 1326507024, %v1590
    %v1606 = vor.u32 %v1604, %v1605
    %vm1607 = vcmp.lt.s32.totalorder %v1588, 1
    %vm1608 = vcmp.lt.s32.totalorder %v1588, 2
    %vm1609 = vcmp.lt.s32.totalorder %v1588, 3
    %vm1610 = vcmp.lt.s32.totalorder %v1588, 4
    %v1611 = vsel %vm1607, %v1591, %v1594
    %v1612 = vsel %vm1610, %v1600, 2102212464
    %v1613 = vsel %vm1609, %v1597, %v1612
    %v1614 = vsel %vm1608, %v1611, %v1613
    %v1615 = vsel %vm1607, %v1594, %v1597
    %v1616 = vsel %vm1610, %v1603, 920167782
    %v1617 = vsel %vm1609, %v1600, %v1616
    %v1618 = vsel %vm1608, %v1615, %v1617
    %v1619 = vsel %vm1607, %v1597, %v1600
    %v1620 = vsel %vm1610, %v1606, 1326507024
    %v1621 = vsel %vm1609, %v1603, %v1620
    %v1622 = vsel %vm1608, %v1619, %v1621
    %v1623 = vshll.u32 %v1583, 8
    %v1624 = vmul.u32.u64.compose %v1623, %v1622
    %v1625 = vextract.low.u32 %v1624
    %v1626 = vextract.high.u32 %v1624
    %v1627 = vmul.u32.u64.compose %v1623, %v1618
    %v1628 = vextract.low.u32 %v1627
    %v1629 = vextract.high.u32 %v1627
    %v1630 = vmul.u32 %v1623, %v1614
    %v1631 = vadd.s32 %v1626, %v1628
    %vm1632 = vc.u32 %v1626, %v1628
    %v1633 = vadd.s32 %v1629, 1
    %v1634 = vsel %vm1632, %v1633, %v1629
    %v1635 = vadd.s32 %v1630, %v1634
    %v1636 = vadd.s32 %v1635, 536870912
    %v1637 = vshrl.u32 %v1636, 30
    %v1638 = vshll.u32 %v1637, 30
    %v1639 = vsub.s32 %v1635, %v1638
    %vm1640 = vcmp.lt.s32.totalorder %v1639, 0
    %v1641 = vsub.s32 0, %v1639
    %v1642 = vsel %vm1640, %v1641, %v1639
    %v1643 = vclz %v1642
    %v1644 = vsub.s32 %v1643, 2
    %vm1645 = vcmp.gt.s32.totalorder 0, %v1644
    %v1646 = vsel %vm1645, 0, %v1644
    %v1647 = vsub.s32 32, %v1646
    %v1648 = vshll.u32 %v1639, %v1646
    %v1649 = vshrl.u32 %v1631, %v1647
    %v1650 = vor.u32 %v1648, %v1649
    %v1651 = vsub.s32 4294967266, %v1646
    %v1652 = vadd.s32 %v1651, 127
    %v1653 = vshll.u32 %v1652, 23
    %v1654 = vor.u32 4788187, %v1653
    %v1655 = vand.u32 2147483647, %v1654
    %v1657 = vcvt.s32.f32 %v1650
    %v1658 = vmul.f32 %v1657, %v1655
    %v1659 = vxor.u32 %v1658, 2147483648
    %v1660 = vsel %vm1577, %v1659, %v1658
    %v1661 = vsub.s32 4, %v1637
    %v1662 = vsel %vm1577, %v1661, %v1637
    %v1663 = vsel %vm1576, %v117, %v1660
    %v1664 = vsel %vm1576, 0, %v1662
    %v1665 = vcosq.f32.pop %v1663
    %v1666 = vsinq.f32.pop %v1663
    %vm1667 = vweird.f32 %v117
    %v1668 = vadd.s32 %v1664, 3
    %v1669 = vand.u32 %v1668, 3
    %vm1670 = vcmp.lt.s32.totalorder %v1669, 2
    %vm1671 = vcmp.eq.s32.totalorder %v1669, 0
    %v1672 = vxor.u32 %v1666, 2147483648
    %v1673 = vsel %vm1671, %v1665, %v1672
    %vm1674 = vcmp.eq.s32.totalorder %v1669, 2
    %v1675 = vxor.u32 %v1665, 2147483648
    %v1676 = vsel %vm1674, %v1675, %v1666
    %v1677 = vsel %vm1670, %v1673, %v1676
    %v1678 = vsel %vm1667, nan, %v1677
    %v1679 = vand.u32 2147483647, %v118
    %vm1680 = vcmp.le.f32.partialorder %v1679, 0.7853982
    %vm1681 = vcmp.lt.s32.totalorder %v118, 0
    %v1682 = vand.u32 %v118, 2139095040
    %v1683 = vshrl.u32 %v1682, 23
    %v1684 = vsub.s32 %v1683, 127
    %v1685 = vand.u32 2147483647, %v118
    %v1686 = vand.u32 %v1685, 8388607
    %v1687 = vor.u32 %v1686, 8388608
    %v1688 = vsub.s32 0, %v1687
    %v1689 = vadd.s32 %v1684, 1
    %vm1690 = vcmp.gt.s32.totalorder %v1689, 0
    %v1691 = vsel %vm1690, %v1689, 0
    %v1692 = vshrl.u32 %v1691, 5
    %v1693 = vand.u32 %v1691, 31
    %v1694 = vsub.s32 32, %v1693
    %v1695 = vshrl.u32 683565275, %v1694
    %v1696 = vshll.u32 683565275, %v1693
    %v1697 = vshrl.u32 2475754826, %v1694
    %v1698 = vor.u32 %v1696, %v1697
    %v1699 = vshll.u32 2475754826, %v1693
    %v1700 = vshrl.u32 2131351028, %v1694
    %v1701 = vor.u32 %v1699, %v1700
    %v1702 = vshll.u32 2131351028, %v1693
    %v1703 = vshrl.u32 2102212464, %v1694
    %v1704 = vor.u32 %v1702, %v1703
    %v1705 = vshll.u32 2102212464, %v1693
    %v1706 = vshrl.u32 920167782, %v1694
    %v1707 = vor.u32 %v1705, %v1706
    %v1708 = vshll.u32 920167782, %v1693
    %v1709 = vshrl.u32 1326507024, %v1694
    %v1710 = vor.u32 %v1708, %v1709
    %vm1711 = vcmp.lt.s32.totalorder %v1692, 1
    %vm1712 = vcmp.lt.s32.totalorder %v1692, 2
    %vm1713 = vcmp.lt.s32.totalorder %v1692, 3
    %vm1714 = vcmp.lt.s32.totalorder %v1692, 4
    %v1715 = vsel %vm1711, %v1695, %v1698
    %v1716 = vsel %vm1714, %v1704, 2102212464
    %v1717 = vsel %vm1713, %v1701, %v1716
    %v1718 = vsel %vm1712, %v1715, %v1717
    %v1719 = vsel %vm1711, %v1698, %v1701
    %v1720 = vsel %vm1714, %v1707, 920167782
    %v1721 = vsel %vm1713, %v1704, %v1720
    %v1722 = vsel %vm1712, %v1719, %v1721
    %v1723 = vsel %vm1711, %v1701, %v1704
    %v1724 = vsel %vm1714, %v1710, 1326507024
    %v1725 = vsel %vm1713, %v1707, %v1724
    %v1726 = vsel %vm1712, %v1723, %v1725
    %v1727 = vshll.u32 %v1687, 8
    %v1728 = vmul.u32.u64.compose %v1727, %v1726
    %v1729 = vextract.low.u32 %v1728
    %v1730 = vextract.high.u32 %v1728
    %v1731 = vmul.u32.u64.compose %v1727, %v1722
    %v1732 = vextract.low.u32 %v1731
    %v1733 = vextract.high.u32 %v1731
    %v1734 = vmul.u32 %v1727, %v1718
    %v1735 = vadd.s32 %v1730, %v1732
    %vm1736 = vc.u32 %v1730, %v1732
    %v1737 = vadd.s32 %v1733, 1
    %v1738 = vsel %vm1736, %v1737, %v1733
    %v1739 = vadd.s32 %v1734, %v1738
    %v1740 = vadd.s32 %v1739, 536870912
    %v1741 = vshrl.u32 %v1740, 30
    %v1742 = vshll.u32 %v1741, 30
    %v1743 = vsub.s32 %v1739, %v1742
    %vm1744 = vcmp.lt.s32.totalorder %v1743, 0
    %v1745 = vsub.s32 0, %v1743
    %v1746 = vsel %vm1744, %v1745, %v1743
    %v1747 = vclz %v1746
    %v1748 = vsub.s32 %v1747, 2
    %vm1749 = vcmp.gt.s32.totalorder 0, %v1748
    %v1750 = vsel %vm1749, 0, %v1748
    %v1751 = vsub.s32 32, %v1750
    %v1752 = vshll.u32 %v1743, %v1750
    %v1753 = vshrl.u32 %v1735, %v1751
    %v1754 = vor.u32 %v1752, %v1753
    %v1755 = vsub.s32 4294967266, %v1750
    %v1756 = vadd.s32 %v1755, 127
    %v1757 = vshll.u32 %v1756, 23
    %v1758 = vor.u32 4788187, %v1757
    %v1759 = vand.u32 2147483647, %v1758
    %v1761 = vcvt.s32.f32 %v1754
    %v1762 = vmul.f32 %v1761, %v1759
    %v1763 = vxor.u32 %v1762, 2147483648
    %v1764 = vsel %vm1681, %v1763, %v1762
    %v1765 = vsub.s32 4, %v1741
    %v1766 = vsel %vm1681, %v1765, %v1741
    %v1767 = vsel %vm1680, %v118, %v1764
    %v1768 = vsel %vm1680, 0, %v1766
    %v1769 = vcosq.f32.pop %v1767
    %v1770 = vsinq.f32.pop %v1767
    %vm1771 = vweird.f32 %v118
    %v1772 = vadd.s32 %v1768, 3
    %v1773 = vand.u32 %v1772, 3
    %vm1774 = vcmp.lt.s32.totalorder %v1773, 2
    %vm1775 = vcmp.eq.s32.totalorder %v1773, 0
    %v1776 = vxor.u32 %v1770, 2147483648
    %v1777 = vsel %vm1775, %v1769, %v1776
    %vm1778 = vcmp.eq.s32.totalorder %v1773, 2
    %v1779 = vxor.u32 %v1769, 2147483648
    %v1780 = vsel %vm1778, %v1779, %v1770
    %v1781 = vsel %vm1774, %v1777, %v1780
    %v1782 = vsel %vm1771, nan, %v1781
    %1783 = vst [vmem:[#allocation2] sm:$0xff] %v222
    %1784 = vst [vmem:[#allocation2 + $0x8] sm:$0xff] %v326
    %1785 = vst [vmem:[#allocation2 + $0x10] sm:$0xff] %v430
    %1786 = vst [vmem:[#allocation2 + $0x18] sm:$0xff] %v534
    %1787 = vst [vmem:[#allocation2 + $0x20] sm:$0xff] %v638
    %1788 = vst [vmem:[#allocation2 + $0x28] sm:$0xff] %v742
    %1789 = vst [vmem:[#allocation2 + $0x30] sm:$0xff] %v846
    %1790 = vst [vmem:[#allocation2 + $0x38] sm:$0xff] %v950
    %1791 = vst [vmem:[#allocation2 + $0x40] sm:$0xff] %v1054
    %1792 = vst [vmem:[#allocation2 + $0x48] sm:$0xff] %v1158
    %1793 = vst [vmem:[#allocation2 + $0x50] sm:$0xff] %v1262
    %1794 = vst [vmem:[#allocation2 + $0x58] sm:$0xff] %v1366
    %1795 = vst [vmem:[#allocation2 + $0x60] sm:$0xff] %v1470
    %1796 = vst [vmem:[#allocation2 + $0x68] sm:$0xff] %v1574
    %1797 = vst [vmem:[#allocation2 + $0x70] sm:$0xff] %v1678
    %1798 = vst [vmem:[#allocation2 + $0x78] sm:$0xff] %v1782
    // Predicated region
    $region14: #{tpu_custom_call.1} parent=1 // pred_check
      _
    $region15: #{tpu_custom_call.1} parent=1 // pred_check_branch
      %1800 = sbr.rel (0) target = $region17
    $region16: #{tpu_custom_call.1} parent=1 // pred_region
      %s1802 = ssub.s32 2048, 2048
      %1803 = vsyncadd [#allocation3], %s1802
      %s1804 = sshll.u32 [#allocation2], 4
      %s1805 = int_to_ptr.vmem [resolvable:$true] %s1804
      %1810 = dma.vmem_to_hbm [thread:$0]  %s1805, 2048, %s3, [#allocation3], 256, 256, 16
    $region17: #{tpu_custom_call.1} parent=1 // pred_fallthru
      _
    // Predicated region
    $region18: #{tpu_custom_call.1} parent=1 // pred_check
      _
    $region19: #{tpu_custom_call.1} parent=1 // pred_check_branch
      %1812 = sbr.rel (0) target = $region21
    $region20: #{tpu_custom_call.1} parent=1 // pred_region
      %1813 = dma.done [#allocation3], 2048
    $region21: #{tpu_custom_call.1} parent=1 // pred_fallthru
      _
    %1814 = vsyncpa [#allocation3], 1

</llo_original>
